<compile_context>
chip_gen: v6e
topology: v6e:2x2x1
jax: 0.10.0
libtpu: 0.0.40
codegen_flags: <defaults>
</compile_context>

<pallas_src>
import functools

import jax
import jax.numpy as jnp
from jax import lax
from jax.experimental import pallas as pl
from jax.experimental.pallas import tpu as pltpu


def _sigmoid(x):
    # One EUP op (tanh) instead of exp + reciprocal; EUP has a single VLIW slot.
    return 0.5 * (jnp.tanh(0.5 * x) + 1.0)


# ------------------------------ fused kernel ---------------------------------

def fused_lstm_kernel(x_ref, *refs, hidden_size, num_layers, seq_len, batch):
    """Whole model in a single invocation; everything VMEM/vreg resident.

    x_ref            : (T*B, C_in)   f32, time-major rows (row = t*B + b)
    per layer l      : wih_ref (Din, 4H) bf16, whh_ref (H, 4H) bf16,
                       b_ref (1, 4H) f32 (b_ih + b_hh folded)
    fc_w_ref         : (H, num_classes) f32
    fc_b_ref         : (1, num_classes) f32
    out_ref          : (B, num_classes) f32
    """
    H, T, B = hidden_size, seq_len, batch
    nl = num_layers
    layer_refs = refs[:3 * nl]
    fc_w_ref = refs[3 * nl]
    fc_b_ref = refs[3 * nl + 1]
    out_ref = refs[3 * nl + 2]

    # Current layer input as a (T*B, Din) value.
    inp = x_ref[...]

    h = None
    for layer in range(nl):
        wih_ref, whh_ref, b_ref = layer_refs[3 * layer:3 * layer + 3]

        # (1) Hoisted input projection: ONE (T*B, Din) x (Din, 4H) MXU matmul
        #     covering every time step, off the sequential critical path.
        gx = (jnp.dot(inp.astype(jnp.bfloat16), wih_ref[...],
                      preferred_element_type=jnp.float32)
              + b_ref[...])                                    # (T*B, 4H) f32

        whh = whh_ref[...]                                     # (H, 4H) bf16, loaded once

        h = jnp.zeros((B, H), jnp.float32)
        c = jnp.zeros((B, H), jnp.float32)
        hs = []

        # (2) Time recurrence fully inside the kernel. T is a trace-time
        #     constant -> static Python unroll: static slices only, no grid /
        #     per-step DMA machinery, full LLO scheduling visibility.
        # TODO(synk): for very long sequences switch to lax.fori_loop over a
        # VMEM gate buffer (pl.ds) to bound code size / live ranges.
        for t in range(T):
            g = gx[t * B:(t + 1) * B, :] + jnp.dot(
                h.astype(jnp.bfloat16), whh,
                preferred_element_type=jnp.float32)            # (B, 4H) f32

            # sigmoid over the full 4H width (i, f, o live there), tanh only on
            # the g-gate lane slice.  All elementwise math stays f32 (v5e-safe).
            s_all = _sigmoid(g)
            i_g = s_all[:, 0 * H:1 * H]
            f_g = s_all[:, 1 * H:2 * H]
            o_g = s_all[:, 3 * H:4 * H]
            g_g = jnp.tanh(g[:, 2 * H:3 * H])

            c = f_g * c + i_g * g_g
            h = o_g * jnp.tanh(c)

            if layer < nl - 1:
                hs.append(h)

        if layer < nl - 1:
            # Inter-layer hidden sequence stays as values (no scratch, no
            # masked partial stores, no VMEM round trip).
            inp = jnp.concatenate(hs, axis=0)                  # (T*B, H)

    # (3) Fused FC + sigmoid head on h_{T-1} (== out[:, -1, :]); kept in f32.
    logits = (jnp.dot(h, fc_w_ref[...], preferred_element_type=jnp.float32)
              + fc_b_ref[...])
    out_ref[...] = _sigmoid(logits)


# ------------------------------ model wrapper --------------------------------

def lstm_model_forward(x, params, hidden_size, num_layers):
    """x: (B, C, T) float32 — same NCL input PyTorch permutes internally."""
    B, C_in, T = x.shape
    H = hidden_size
    num_classes = params["fc_w"].shape[1]

    # time-major, flattened rows: row index = t*B + b
    x2d = jnp.transpose(x, (2, 0, 1)).reshape(T * B, C_in).astype(jnp.float32)

    inputs = [x2d]
    for w_ih_t, w_hh_t, b in params["layers"]:
        # bf16 MXU operands (f32 accumulation happens in-kernel); bias stays f32.
        inputs += [w_ih_t.astype(jnp.bfloat16), w_hh_t.astype(jnp.bfloat16), b]
    inputs += [params["fc_w"], params["fc_b"]]

    kernel = functools.partial(
        fused_lstm_kernel, hidden_size=H, num_layers=num_layers,
        seq_len=T, batch=B)

    # Single invocation, no grid: the whole (tiny) problem is VMEM-resident.
    # At large H / T one would tile the 4H gate dim and chunk T; not needed here.
    return pl.pallas_call(
        kernel,
        out_shape=jax.ShapeDtypeStruct((B, num_classes), jnp.float32),
    )(*inputs)


# ----------------------------- pure-JAX reference ----------------------------

def lstm_model_ref(x, params, hidden_size, num_layers):
    H = hidden_size
    h_seq = jnp.transpose(x, (2, 0, 1)).astype(jnp.float32)   # (T, B, C)
    B = h_seq.shape[1]
    for l in range(num_layers):
        w_ih_t, w_hh_t, b = params["layers"][l]

        def step(carry, x_t, w_ih_t=w_ih_t, w_hh_t=w_hh_t, b=b):
            h, c = carry
            gates = x_t @ w_ih_t + h @ w_hh_t + b
            i = jax.nn.sigmoid(gates[:, 0 * H:1 * H])
            f = jax.nn.sigmoid(gates[:, 1 * H:2 * H])
            g = jnp.tanh(gates[:, 2 * H:3 * H])
            o = jax.nn.sigmoid(gates[:, 3 * H:4 * H])
            c = f * c + i * g
            h = o * jnp.tanh(c)
            return (h, c), h

        init = (jnp.zeros((B, H), jnp.float32), jnp.zeros((B, H), jnp.float32))
        _, h_seq = lax.scan(step, init, h_seq)
    h_last = h_seq[-1]
    return jax.nn.sigmoid(h_last @ params["fc_w"] + params["fc_b"])


# ------------------------------ parameter init -------------------------------

def init_params(key, input_channels, hidden_size, num_layers, num_classes):
    """PyTorch-style uniform(-1/sqrt(H), 1/sqrt(H)) init, deterministic, f32."""
    H = hidden_size
    k = 1.0 / jnp.sqrt(jnp.float32(H))
    layers = []
    for l in range(num_layers):
        din = input_channels if l == 0 else H
        key, k1, k2, k3, k4 = jax.random.split(key, 5)
        w_ih = jax.random.uniform(k1, (4 * H, din), jnp.float32, -k, k)
        w_hh = jax.random.uniform(k2, (4 * H, H), jnp.float32, -k, k)
        b_ih = jax.random.uniform(k3, (4 * H,), jnp.float32, -k, k)
        b_hh = jax.random.uniform(k4, (4 * H,), jnp.float32, -k, k)
        # pre-transpose weights and fold the two biases (glue, outside kernel)
        layers.append((w_ih.T, w_hh.T, (b_ih + b_hh).reshape(1, 4 * H)))
    key, k5, k6 = jax.random.split(key, 3)
    kf = 1.0 / jnp.sqrt(jnp.float32(H))
    fc_w = jax.random.uniform(k5, (num_classes, H), jnp.float32, -kf, kf)
    fc_b = jax.random.uniform(k6, (num_classes,), jnp.float32, -kf, kf)
    return {"layers": layers,
            "fc_w": fc_w.T,                       # (H, num_classes)
            "fc_b": fc_b.reshape(1, num_classes)}


# ----------------------------------- main -------------------------------------

if __name__ == "__main__":
    B, C_IN, T = 2, 4, 8          # batch, input_channels, seq_len
    HIDDEN, LAYERS, N_CLASSES = 32, 2, 5

    key = jax.random.PRNGKey(0)
    key, xk = jax.random.split(key)
    x = jax.random.normal(xk, (B, C_IN, T), jnp.float32)   # (B, C, T) like PyTorch

    params = init_params(key, C_IN, HIDDEN, LAYERS, N_CLASSES)

    out = jax.block_until_ready(lstm_model_forward(x, params, HIDDEN, LAYERS))
    ref = jax.block_until_ready(lstm_model_ref(x, params, HIDDEN, LAYERS))

    assert out.shape == (B, N_CLASSES), out.shape
    max_err = float(jnp.max(jnp.abs(out - ref)))
    # bf16 MXU operands vs. f32 reference -> loosened tolerance.
    assert max_err < 2e-2, (max_err, out, ref)

    print("KERNEL_OK")
</pallas_src>

<mosaic_0001>
module attributes {stable_mosaic.version = 11 : i64} {
  func.func @fused_lstm_kernel(%arg0: memref<16x4xf32, #tpu.memory_space<vmem>>, %arg1: memref<4x128xbf16, #tpu.memory_space<vmem>>, %arg2: memref<32x128xbf16, #tpu.memory_space<vmem>>, %arg3: memref<1x128xf32, #tpu.memory_space<vmem>>, %arg4: memref<32x128xbf16, #tpu.memory_space<vmem>>, %arg5: memref<32x128xbf16, #tpu.memory_space<vmem>>, %arg6: memref<1x128xf32, #tpu.memory_space<vmem>>, %arg7: memref<32x5xf32, #tpu.memory_space<vmem>>, %arg8: memref<1x5xf32, #tpu.memory_space<vmem>>, %arg9: memref<2x5xf32, #tpu.memory_space<vmem>>) attributes {dimension_semantics = [], scalar_prefetch = 0 : i64, scratch_operands = 0 : i64, tpu.core_type = #tpu.core_type<tc>} {
    %c0 = arith.constant 0 : index
    %c0_0 = arith.constant 0 : index
    %0 = vector.load %arg0[%c0, %c0_0] : memref<16x4xf32, #tpu.memory_space<vmem>>, vector<16x4xf32>
    %1 = arith.truncf %0 : vector<16x4xf32> to vector<16x4xbf16>
    %c0_1 = arith.constant 0 : index
    %c0_2 = arith.constant 0 : index
    %2 = vector.load %arg1[%c0_1, %c0_2] : memref<4x128xbf16, #tpu.memory_space<vmem>>, vector<4x128xbf16>
    %cst = arith.constant dense<0.000000e+00> : vector<16x128xf32>
    %3 = tpu.matmul %1, %2, %cst {dimension_numbers = #tpu.dot_dimension_numbers<[1], [0], [0], [1], [0, 0, 1, 1], [], []>} : vector<16x4xbf16>, vector<4x128xbf16>, vector<16x128xf32> -> vector<16x128xf32>
    %c0_3 = arith.constant 0 : index
    %c0_4 = arith.constant 0 : index
    %4 = vector.load %arg3[%c0_3, %c0_4] : memref<1x128xf32, #tpu.memory_space<vmem>>, vector<1x128xf32>
    %5 = vector.broadcast %4 : vector<1x128xf32> to vector<16x128xf32>
    %6 = arith.addf %3, %5 : vector<16x128xf32>
    %c0_5 = arith.constant 0 : index
    %c0_6 = arith.constant 0 : index
    %7 = vector.load %arg2[%c0_5, %c0_6] : memref<32x128xbf16, #tpu.memory_space<vmem>>, vector<32x128xbf16>
    %cst_7 = arith.constant 0.000000e+00 : f32
    %8 = vector.broadcast %cst_7 : f32 to vector<2x32xf32>
    %cst_8 = arith.constant 0.000000e+00 : f32
    %9 = vector.broadcast %cst_8 : f32 to vector<2x32xf32>
    %10 = vector.extract_strided_slice %6 {offsets = [0, 0], sizes = [2, 128], strides = [1, 1]} : vector<16x128xf32> to vector<2x128xf32>
    %11 = arith.truncf %8 : vector<2x32xf32> to vector<2x32xbf16>
    %cst_9 = arith.constant dense<0.000000e+00> : vector<2x128xf32>
    %12 = tpu.matmul %11, %7, %cst_9 {dimension_numbers = #tpu.dot_dimension_numbers<[1], [0], [0], [1], [0, 0, 1, 1], [], []>} : vector<2x32xbf16>, vector<32x128xbf16>, vector<2x128xf32> -> vector<2x128xf32>
    %13 = arith.addf %10, %12 : vector<2x128xf32>
    %cst_10 = arith.constant 5.000000e-01 : f32
    %14 = vector.broadcast %cst_10 : f32 to vector<2x128xf32>
    %15 = arith.mulf %14, %13 : vector<2x128xf32>
    %16 = math.tanh %15 : vector<2x128xf32>
    %cst_11 = arith.constant 1.000000e+00 : f32
    %17 = vector.broadcast %cst_11 : f32 to vector<2x128xf32>
    %18 = arith.addf %16, %17 : vector<2x128xf32>
    %cst_12 = arith.constant 5.000000e-01 : f32
    %19 = vector.broadcast %cst_12 : f32 to vector<2x128xf32>
    %20 = arith.mulf %19, %18 : vector<2x128xf32>
    %21 = vector.extract_strided_slice %20 {offsets = [0, 0], sizes = [2, 32], strides = [1, 1]} : vector<2x128xf32> to vector<2x32xf32>
    %22 = vector.extract_strided_slice %20 {offsets = [0, 32], sizes = [2, 32], strides = [1, 1]} : vector<2x128xf32> to vector<2x32xf32>
    %23 = vector.extract_strided_slice %20 {offsets = [0, 96], sizes = [2, 32], strides = [1, 1]} : vector<2x128xf32> to vector<2x32xf32>
    %24 = vector.extract_strided_slice %13 {offsets = [0, 64], sizes = [2, 32], strides = [1, 1]} : vector<2x128xf32> to vector<2x32xf32>
    %25 = math.tanh %24 : vector<2x32xf32>
    %26 = arith.mulf %22, %9 : vector<2x32xf32>
    %27 = arith.mulf %21, %25 : vector<2x32xf32>
    %28 = arith.addf %26, %27 : vector<2x32xf32>
    %29 = math.tanh %28 : vector<2x32xf32>
    %30 = arith.mulf %23, %29 : vector<2x32xf32>
    %31 = vector.extract_strided_slice %6 {offsets = [2, 0], sizes = [2, 128], strides = [1, 1]} : vector<16x128xf32> to vector<2x128xf32>
    %32 = arith.truncf %30 : vector<2x32xf32> to vector<2x32xbf16>
    %cst_13 = arith.constant dense<0.000000e+00> : vector<2x128xf32>
    %33 = tpu.matmul %32, %7, %cst_13 {dimension_numbers = #tpu.dot_dimension_numbers<[1], [0], [0], [1], [0, 0, 1, 1], [], []>} : vector<2x32xbf16>, vector<32x128xbf16>, vector<2x128xf32> -> vector<2x128xf32>
    %34 = arith.addf %31, %33 : vector<2x128xf32>
    %cst_14 = arith.constant 5.000000e-01 : f32
    %35 = vector.broadcast %cst_14 : f32 to vector<2x128xf32>
    %36 = arith.mulf %35, %34 : vector<2x128xf32>
    %37 = math.tanh %36 : vector<2x128xf32>
    %cst_15 = arith.constant 1.000000e+00 : f32
    %38 = vector.broadcast %cst_15 : f32 to vector<2x128xf32>
    %39 = arith.addf %37, %38 : vector<2x128xf32>
    %cst_16 = arith.constant 5.000000e-01 : f32
    %40 = vector.broadcast %cst_16 : f32 to vector<2x128xf32>
    %41 = arith.mulf %40, %39 : vector<2x128xf32>
    %42 = vector.extract_strided_slice %41 {offsets = [0, 0], sizes = [2, 32], strides = [1, 1]} : vector<2x128xf32> to vector<2x32xf32>
    %43 = vector.extract_strided_slice %41 {offsets = [0, 32], sizes = [2, 32], strides = [1, 1]} : vector<2x128xf32> to vector<2x32xf32>
    %44 = vector.extract_strided_slice %41 {offsets = [0, 96], sizes = [2, 32], strides = [1, 1]} : vector<2x128xf32> to vector<2x32xf32>
    %45 = vector.extract_strided_slice %34 {offsets = [0, 64], sizes = [2, 32], strides = [1, 1]} : vector<2x128xf32> to vector<2x32xf32>
    %46 = math.tanh %45 : vector<2x32xf32>
    %47 = arith.mulf %43, %28 : vector<2x32xf32>
    %48 = arith.mulf %42, %46 : vector<2x32xf32>
    %49 = arith.addf %47, %48 : vector<2x32xf32>
    %50 = math.tanh %49 : vector<2x32xf32>
    %51 = arith.mulf %44, %50 : vector<2x32xf32>
    %52 = vector.extract_strided_slice %6 {offsets = [4, 0], sizes = [2, 128], strides = [1, 1]} : vector<16x128xf32> to vector<2x128xf32>
    %53 = arith.truncf %51 : vector<2x32xf32> to vector<2x32xbf16>
    %cst_17 = arith.constant dense<0.000000e+00> : vector<2x128xf32>
    %54 = tpu.matmul %53, %7, %cst_17 {dimension_numbers = #tpu.dot_dimension_numbers<[1], [0], [0], [1], [0, 0, 1, 1], [], []>} : vector<2x32xbf16>, vector<32x128xbf16>, vector<2x128xf32> -> vector<2x128xf32>
    %55 = arith.addf %52, %54 : vector<2x128xf32>
    %cst_18 = arith.constant 5.000000e-01 : f32
    %56 = vector.broadcast %cst_18 : f32 to vector<2x128xf32>
    %57 = arith.mulf %56, %55 : vector<2x128xf32>
    %58 = math.tanh %57 : vector<2x128xf32>
    %cst_19 = arith.constant 1.000000e+00 : f32
    %59 = vector.broadcast %cst_19 : f32 to vector<2x128xf32>
    %60 = arith.addf %58, %59 : vector<2x128xf32>
    %cst_20 = arith.constant 5.000000e-01 : f32
    %61 = vector.broadcast %cst_20 : f32 to vector<2x128xf32>
    %62 = arith.mulf %61, %60 : vector<2x128xf32>
    %63 = vector.extract_strided_slice %62 {offsets = [0, 0], sizes = [2, 32], strides = [1, 1]} : vector<2x128xf32> to vector<2x32xf32>
    %64 = vector.extract_strided_slice %62 {offsets = [0, 32], sizes = [2, 32], strides = [1, 1]} : vector<2x128xf32> to vector<2x32xf32>
    %65 = vector.extract_strided_slice %62 {offsets = [0, 96], sizes = [2, 32], strides = [1, 1]} : vector<2x128xf32> to vector<2x32xf32>
    %66 = vector.extract_strided_slice %55 {offsets = [0, 64], sizes = [2, 32], strides = [1, 1]} : vector<2x128xf32> to vector<2x32xf32>
    %67 = math.tanh %66 : vector<2x32xf32>
    %68 = arith.mulf %64, %49 : vector<2x32xf32>
    %69 = arith.mulf %63, %67 : vector<2x32xf32>
    %70 = arith.addf %68, %69 : vector<2x32xf32>
    %71 = math.tanh %70 : vector<2x32xf32>
    %72 = arith.mulf %65, %71 : vector<2x32xf32>
    %73 = vector.extract_strided_slice %6 {offsets = [6, 0], sizes = [2, 128], strides = [1, 1]} : vector<16x128xf32> to vector<2x128xf32>
    %74 = arith.truncf %72 : vector<2x32xf32> to vector<2x32xbf16>
    %cst_21 = arith.constant dense<0.000000e+00> : vector<2x128xf32>
    %75 = tpu.matmul %74, %7, %cst_21 {dimension_numbers = #tpu.dot_dimension_numbers<[1], [0], [0], [1], [0, 0, 1, 1], [], []>} : vector<2x32xbf16>, vector<32x128xbf16>, vector<2x128xf32> -> vector<2x128xf32>
    %76 = arith.addf %73, %75 : vector<2x128xf32>
    %cst_22 = arith.constant 5.000000e-01 : f32
    %77 = vector.broadcast %cst_22 : f32 to vector<2x128xf32>
    %78 = arith.mulf %77, %76 : vector<2x128xf32>
    %79 = math.tanh %78 : vector<2x128xf32>
    %cst_23 = arith.constant 1.000000e+00 : f32
    %80 = vector.broadcast %cst_23 : f32 to vector<2x128xf32>
    %81 = arith.addf %79, %80 : vector<2x128xf32>
    %cst_24 = arith.constant 5.000000e-01 : f32
    %82 = vector.broadcast %cst_24 : f32 to vector<2x128xf32>
    %83 = arith.mulf %82, %81 : vector<2x128xf32>
    %84 = vector.extract_strided_slice %83 {offsets = [0, 0], sizes = [2, 32], strides = [1, 1]} : vector<2x128xf32> to vector<2x32xf32>
    %85 = vector.extract_strided_slice %83 {offsets = [0, 32], sizes = [2, 32], strides = [1, 1]} : vector<2x128xf32> to vector<2x32xf32>
    %86 = vector.extract_strided_slice %83 {offsets = [0, 96], sizes = [2, 32], strides = [1, 1]} : vector<2x128xf32> to vector<2x32xf32>
    %87 = vector.extract_strided_slice %76 {offsets = [0, 64], sizes = [2, 32], strides = [1, 1]} : vector<2x128xf32> to vector<2x32xf32>
    %88 = math.tanh %87 : vector<2x32xf32>
    %89 = arith.mulf %85, %70 : vector<2x32xf32>
    %90 = arith.mulf %84, %88 : vector<2x32xf32>
    %91 = arith.addf %89, %90 : vector<2x32xf32>
    %92 = math.tanh %91 : vector<2x32xf32>
    %93 = arith.mulf %86, %92 : vector<2x32xf32>
    %94 = vector.extract_strided_slice %6 {offsets = [8, 0], sizes = [2, 128], strides = [1, 1]} : vector<16x128xf32> to vector<2x128xf32>
    %95 = arith.truncf %93 : vector<2x32xf32> to vector<2x32xbf16>
    %cst_25 = arith.constant dense<0.000000e+00> : vector<2x128xf32>
    %96 = tpu.matmul %95, %7, %cst_25 {dimension_numbers = #tpu.dot_dimension_numbers<[1], [0], [0], [1], [0, 0, 1, 1], [], []>} : vector<2x32xbf16>, vector<32x128xbf16>, vector<2x128xf32> -> vector<2x128xf32>
    %97 = arith.addf %94, %96 : vector<2x128xf32>
    %cst_26 = arith.constant 5.000000e-01 : f32
    %98 = vector.broadcast %cst_26 : f32 to vector<2x128xf32>
    %99 = arith.mulf %98, %97 : vector<2x128xf32>
    %100 = math.tanh %99 : vector<2x128xf32>
    %cst_27 = arith.constant 1.000000e+00 : f32
    %101 = vector.broadcast %cst_27 : f32 to vector<2x128xf32>
    %102 = arith.addf %100, %101 : vector<2x128xf32>
    %cst_28 = arith.constant 5.000000e-01 : f32
    %103 = vector.broadcast %cst_28 : f32 to vector<2x128xf32>
    %104 = arith.mulf %103, %102 : vector<2x128xf32>
    %105 = vector.extract_strided_slice %104 {offsets = [0, 0], sizes = [2, 32], strides = [1, 1]} : vector<2x128xf32> to vector<2x32xf32>
    %106 = vector.extract_strided_slice %104 {offsets = [0, 32], sizes = [2, 32], strides = [1, 1]} : vector<2x128xf32> to vector<2x32xf32>
    %107 = vector.extract_strided_slice %104 {offsets = [0, 96], sizes = [2, 32], strides = [1, 1]} : vector<2x128xf32> to vector<2x32xf32>
    %108 = vector.extract_strided_slice %97 {offsets = [0, 64], sizes = [2, 32], strides = [1, 1]} : vector<2x128xf32> to vector<2x32xf32>
    %109 = math.tanh %108 : vector<2x32xf32>
    %110 = arith.mulf %106, %91 : vector<2x32xf32>
    %111 = arith.mulf %105, %109 : vector<2x32xf32>
    %112 = arith.addf %110, %111 : vector<2x32xf32>
    %113 = math.tanh %112 : vector<2x32xf32>
    %114 = arith.mulf %107, %113 : vector<2x32xf32>
    %115 = vector.extract_strided_slice %6 {offsets = [10, 0], sizes = [2, 128], strides = [1, 1]} : vector<16x128xf32> to vector<2x128xf32>
    %116 = arith.truncf %114 : vector<2x32xf32> to vector<2x32xbf16>
    %cst_29 = arith.constant dense<0.000000e+00> : vector<2x128xf32>
    %117 = tpu.matmul %116, %7, %cst_29 {dimension_numbers = #tpu.dot_dimension_numbers<[1], [0], [0], [1], [0, 0, 1, 1], [], []>} : vector<2x32xbf16>, vector<32x128xbf16>, vector<2x128xf32> -> vector<2x128xf32>
    %118 = arith.addf %115, %117 : vector<2x128xf32>
    %cst_30 = arith.constant 5.000000e-01 : f32
    %119 = vector.broadcast %cst_30 : f32 to vector<2x128xf32>
    %120 = arith.mulf %119, %118 : vector<2x128xf32>
    %121 = math.tanh %120 : vector<2x128xf32>
    %cst_31 = arith.constant 1.000000e+00 : f32
    %122 = vector.broadcast %cst_31 : f32 to vector<2x128xf32>
    %123 = arith.addf %121, %122 : vector<2x128xf32>
    %cst_32 = arith.constant 5.000000e-01 : f32
    %124 = vector.broadcast %cst_32 : f32 to vector<2x128xf32>
    %125 = arith.mulf %124, %123 : vector<2x128xf32>
    %126 = vector.extract_strided_slice %125 {offsets = [0, 0], sizes = [2, 32], strides = [1, 1]} : vector<2x128xf32> to vector<2x32xf32>
    %127 = vector.extract_strided_slice %125 {offsets = [0, 32], sizes = [2, 32], strides = [1, 1]} : vector<2x128xf32> to vector<2x32xf32>
    %128 = vector.extract_strided_slice %125 {offsets = [0, 96], sizes = [2, 32], strides = [1, 1]} : vector<2x128xf32> to vector<2x32xf32>
    %129 = vector.extract_strided_slice %118 {offsets = [0, 64], sizes = [2, 32], strides = [1, 1]} : vector<2x128xf32> to vector<2x32xf32>
    %130 = math.tanh %129 : vector<2x32xf32>
    %131 = arith.mulf %127, %112 : vector<2x32xf32>
    %132 = arith.mulf %126, %130 : vector<2x32xf32>
    %133 = arith.addf %131, %132 : vector<2x32xf32>
    %134 = math.tanh %133 : vector<2x32xf32>
    %135 = arith.mulf %128, %134 : vector<2x32xf32>
    %136 = vector.extract_strided_slice %6 {offsets = [12, 0], sizes = [2, 128], strides = [1, 1]} : vector<16x128xf32> to vector<2x128xf32>
    %137 = arith.truncf %135 : vector<2x32xf32> to vector<2x32xbf16>
    %cst_33 = arith.constant dense<0.000000e+00> : vector<2x128xf32>
    %138 = tpu.matmul %137, %7, %cst_33 {dimension_numbers = #tpu.dot_dimension_numbers<[1], [0], [0], [1], [0, 0, 1, 1], [], []>} : vector<2x32xbf16>, vector<32x128xbf16>, vector<2x128xf32> -> vector<2x128xf32>
    %139 = arith.addf %136, %138 : vector<2x128xf32>
    %cst_34 = arith.constant 5.000000e-01 : f32
    %140 = vector.broadcast %cst_34 : f32 to vector<2x128xf32>
    %141 = arith.mulf %140, %139 : vector<2x128xf32>
    %142 = math.tanh %141 : vector<2x128xf32>
    %cst_35 = arith.constant 1.000000e+00 : f32
    %143 = vector.broadcast %cst_35 : f32 to vector<2x128xf32>
    %144 = arith.addf %142, %143 : vector<2x128xf32>
    %cst_36 = arith.constant 5.000000e-01 : f32
    %145 = vector.broadcast %cst_36 : f32 to vector<2x128xf32>
    %146 = arith.mulf %145, %144 : vector<2x128xf32>
    %147 = vector.extract_strided_slice %146 {offsets = [0, 0], sizes = [2, 32], strides = [1, 1]} : vector<2x128xf32> to vector<2x32xf32>
    %148 = vector.extract_strided_slice %146 {offsets = [0, 32], sizes = [2, 32], strides = [1, 1]} : vector<2x128xf32> to vector<2x32xf32>
    %149 = vector.extract_strided_slice %146 {offsets = [0, 96], sizes = [2, 32], strides = [1, 1]} : vector<2x128xf32> to vector<2x32xf32>
    %150 = vector.extract_strided_slice %139 {offsets = [0, 64], sizes = [2, 32], strides = [1, 1]} : vector<2x128xf32> to vector<2x32xf32>
    %151 = math.tanh %150 : vector<2x32xf32>
    %152 = arith.mulf %148, %133 : vector<2x32xf32>
    %153 = arith.mulf %147, %151 : vector<2x32xf32>
    %154 = arith.addf %152, %153 : vector<2x32xf32>
    %155 = math.tanh %154 : vector<2x32xf32>
    %156 = arith.mulf %149, %155 : vector<2x32xf32>
    %157 = vector.extract_strided_slice %6 {offsets = [14, 0], sizes = [2, 128], strides = [1, 1]} : vector<16x128xf32> to vector<2x128xf32>
    %158 = arith.truncf %156 : vector<2x32xf32> to vector<2x32xbf16>
    %cst_37 = arith.constant dense<0.000000e+00> : vector<2x128xf32>
    %159 = tpu.matmul %158, %7, %cst_37 {dimension_numbers = #tpu.dot_dimension_numbers<[1], [0], [0], [1], [0, 0, 1, 1], [], []>} : vector<2x32xbf16>, vector<32x128xbf16>, vector<2x128xf32> -> vector<2x128xf32>
    %160 = arith.addf %157, %159 : vector<2x128xf32>
    %cst_38 = arith.constant 5.000000e-01 : f32
    %161 = vector.broadcast %cst_38 : f32 to vector<2x128xf32>
    %162 = arith.mulf %161, %160 : vector<2x128xf32>
    %163 = math.tanh %162 : vector<2x128xf32>
    %cst_39 = arith.constant 1.000000e+00 : f32
    %164 = vector.broadcast %cst_39 : f32 to vector<2x128xf32>
    %165 = arith.addf %163, %164 : vector<2x128xf32>
    %cst_40 = arith.constant 5.000000e-01 : f32
    %166 = vector.broadcast %cst_40 : f32 to vector<2x128xf32>
    %167 = arith.mulf %166, %165 : vector<2x128xf32>
    %168 = vector.extract_strided_slice %167 {offsets = [0, 0], sizes = [2, 32], strides = [1, 1]} : vector<2x128xf32> to vector<2x32xf32>
    %169 = vector.extract_strided_slice %167 {offsets = [0, 32], sizes = [2, 32], strides = [1, 1]} : vector<2x128xf32> to vector<2x32xf32>
    %170 = vector.extract_strided_slice %167 {offsets = [0, 96], sizes = [2, 32], strides = [1, 1]} : vector<2x128xf32> to vector<2x32xf32>
    %171 = vector.extract_strided_slice %160 {offsets = [0, 64], sizes = [2, 32], strides = [1, 1]} : vector<2x128xf32> to vector<2x32xf32>
    %172 = math.tanh %171 : vector<2x32xf32>
    %173 = arith.mulf %169, %154 : vector<2x32xf32>
    %174 = arith.mulf %168, %172 : vector<2x32xf32>
    %175 = arith.addf %173, %174 : vector<2x32xf32>
    %176 = math.tanh %175 : vector<2x32xf32>
    %177 = arith.mulf %170, %176 : vector<2x32xf32>
    %178 = tpu.concatenate %30, %51, %72, %93, %114, %135, %156, %177 in 0 : vector<2x32xf32>, vector<2x32xf32>, vector<2x32xf32>, vector<2x32xf32>, vector<2x32xf32>, vector<2x32xf32>, vector<2x32xf32>, vector<2x32xf32> -> vector<16x32xf32>
    %179 = arith.truncf %178 : vector<16x32xf32> to vector<16x32xbf16>
    %c0_41 = arith.constant 0 : index
    %c0_42 = arith.constant 0 : index
    %180 = vector.load %arg4[%c0_41, %c0_42] : memref<32x128xbf16, #tpu.memory_space<vmem>>, vector<32x128xbf16>
    %cst_43 = arith.constant dense<0.000000e+00> : vector<16x128xf32>
    %181 = tpu.matmul %179, %180, %cst_43 {dimension_numbers = #tpu.dot_dimension_numbers<[1], [0], [0], [1], [0, 0, 1, 1], [], []>} : vector<16x32xbf16>, vector<32x128xbf16>, vector<16x128xf32> -> vector<16x128xf32>
    %c0_44 = arith.constant 0 : index
    %c0_45 = arith.constant 0 : index
    %182 = vector.load %arg6[%c0_44, %c0_45] : memref<1x128xf32, #tpu.memory_space<vmem>>, vector<1x128xf32>
    %183 = vector.broadcast %182 : vector<1x128xf32> to vector<16x128xf32>
    %184 = arith.addf %181, %183 : vector<16x128xf32>
    %c0_46 = arith.constant 0 : index
    %c0_47 = arith.constant 0 : index
    %185 = vector.load %arg5[%c0_46, %c0_47] : memref<32x128xbf16, #tpu.memory_space<vmem>>, vector<32x128xbf16>
    %cst_48 = arith.constant 0.000000e+00 : f32
    %186 = vector.broadcast %cst_48 : f32 to vector<2x32xf32>
    %cst_49 = arith.constant 0.000000e+00 : f32
    %187 = vector.broadcast %cst_49 : f32 to vector<2x32xf32>
    %188 = vector.extract_strided_slice %184 {offsets = [0, 0], sizes = [2, 128], strides = [1, 1]} : vector<16x128xf32> to vector<2x128xf32>
    %189 = arith.truncf %186 : vector<2x32xf32> to vector<2x32xbf16>
    %cst_50 = arith.constant dense<0.000000e+00> : vector<2x128xf32>
    %190 = tpu.matmul %189, %185, %cst_50 {dimension_numbers = #tpu.dot_dimension_numbers<[1], [0], [0], [1], [0, 0, 1, 1], [], []>} : vector<2x32xbf16>, vector<32x128xbf16>, vector<2x128xf32> -> vector<2x128xf32>
    %191 = arith.addf %188, %190 : vector<2x128xf32>
    %cst_51 = arith.constant 5.000000e-01 : f32
    %192 = vector.broadcast %cst_51 : f32 to vector<2x128xf32>
    %193 = arith.mulf %192, %191 : vector<2x128xf32>
    %194 = math.tanh %193 : vector<2x128xf32>
    %cst_52 = arith.constant 1.000000e+00 : f32
    %195 = vector.broadcast %cst_52 : f32 to vector<2x128xf32>
    %196 = arith.addf %194, %195 : vector<2x128xf32>
    %cst_53 = arith.constant 5.000000e-01 : f32
    %197 = vector.broadcast %cst_53 : f32 to vector<2x128xf32>
    %198 = arith.mulf %197, %196 : vector<2x128xf32>
    %199 = vector.extract_strided_slice %198 {offsets = [0, 0], sizes = [2, 32], strides = [1, 1]} : vector<2x128xf32> to vector<2x32xf32>
    %200 = vector.extract_strided_slice %198 {offsets = [0, 32], sizes = [2, 32], strides = [1, 1]} : vector<2x128xf32> to vector<2x32xf32>
    %201 = vector.extract_strided_slice %198 {offsets = [0, 96], sizes = [2, 32], strides = [1, 1]} : vector<2x128xf32> to vector<2x32xf32>
    %202 = vector.extract_strided_slice %191 {offsets = [0, 64], sizes = [2, 32], strides = [1, 1]} : vector<2x128xf32> to vector<2x32xf32>
    %203 = math.tanh %202 : vector<2x32xf32>
    %204 = arith.mulf %200, %187 : vector<2x32xf32>
    %205 = arith.mulf %199, %203 : vector<2x32xf32>
    %206 = arith.addf %204, %205 : vector<2x32xf32>
    %207 = math.tanh %206 : vector<2x32xf32>
    %208 = arith.mulf %201, %207 : vector<2x32xf32>
    %209 = vector.extract_strided_slice %184 {offsets = [2, 0], sizes = [2, 128], strides = [1, 1]} : vector<16x128xf32> to vector<2x128xf32>
    %210 = arith.truncf %208 : vector<2x32xf32> to vector<2x32xbf16>
    %cst_54 = arith.constant dense<0.000000e+00> : vector<2x128xf32>
    %211 = tpu.matmul %210, %185, %cst_54 {dimension_numbers = #tpu.dot_dimension_numbers<[1], [0], [0], [1], [0, 0, 1, 1], [], []>} : vector<2x32xbf16>, vector<32x128xbf16>, vector<2x128xf32> -> vector<2x128xf32>
    %212 = arith.addf %209, %211 : vector<2x128xf32>
    %cst_55 = arith.constant 5.000000e-01 : f32
    %213 = vector.broadcast %cst_55 : f32 to vector<2x128xf32>
    %214 = arith.mulf %213, %212 : vector<2x128xf32>
    %215 = math.tanh %214 : vector<2x128xf32>
    %cst_56 = arith.constant 1.000000e+00 : f32
    %216 = vector.broadcast %cst_56 : f32 to vector<2x128xf32>
    %217 = arith.addf %215, %216 : vector<2x128xf32>
    %cst_57 = arith.constant 5.000000e-01 : f32
    %218 = vector.broadcast %cst_57 : f32 to vector<2x128xf32>
    %219 = arith.mulf %218, %217 : vector<2x128xf32>
    %220 = vector.extract_strided_slice %219 {offsets = [0, 0], sizes = [2, 32], strides = [1, 1]} : vector<2x128xf32> to vector<2x32xf32>
    %221 = vector.extract_strided_slice %219 {offsets = [0, 32], sizes = [2, 32], strides = [1, 1]} : vector<2x128xf32> to vector<2x32xf32>
    %222 = vector.extract_strided_slice %219 {offsets = [0, 96], sizes = [2, 32], strides = [1, 1]} : vector<2x128xf32> to vector<2x32xf32>
    %223 = vector.extract_strided_slice %212 {offsets = [0, 64], sizes = [2, 32], strides = [1, 1]} : vector<2x128xf32> to vector<2x32xf32>
    %224 = math.tanh %223 : vector<2x32xf32>
    %225 = arith.mulf %221, %206 : vector<2x32xf32>
    %226 = arith.mulf %220, %224 : vector<2x32xf32>
    %227 = arith.addf %225, %226 : vector<2x32xf32>
    %228 = math.tanh %227 : vector<2x32xf32>
    %229 = arith.mulf %222, %228 : vector<2x32xf32>
    %230 = vector.extract_strided_slice %184 {offsets = [4, 0], sizes = [2, 128], strides = [1, 1]} : vector<16x128xf32> to vector<2x128xf32>
    %231 = arith.truncf %229 : vector<2x32xf32> to vector<2x32xbf16>
    %cst_58 = arith.constant dense<0.000000e+00> : vector<2x128xf32>
    %232 = tpu.matmul %231, %185, %cst_58 {dimension_numbers = #tpu.dot_dimension_numbers<[1], [0], [0], [1], [0, 0, 1, 1], [], []>} : vector<2x32xbf16>, vector<32x128xbf16>, vector<2x128xf32> -> vector<2x128xf32>
    %233 = arith.addf %230, %232 : vector<2x128xf32>
    %cst_59 = arith.constant 5.000000e-01 : f32
    %234 = vector.broadcast %cst_59 : f32 to vector<2x128xf32>
    %235 = arith.mulf %234, %233 : vector<2x128xf32>
    %236 = math.tanh %235 : vector<2x128xf32>
    %cst_60 = arith.constant 1.000000e+00 : f32
    %237 = vector.broadcast %cst_60 : f32 to vector<2x128xf32>
    %238 = arith.addf %236, %237 : vector<2x128xf32>
    %cst_61 = arith.constant 5.000000e-01 : f32
    %239 = vector.broadcast %cst_61 : f32 to vector<2x128xf32>
    %240 = arith.mulf %239, %238 : vector<2x128xf32>
    %241 = vector.extract_strided_slice %240 {offsets = [0, 0], sizes = [2, 32], strides = [1, 1]} : vector<2x128xf32> to vector<2x32xf32>
    %242 = vector.extract_strided_slice %240 {offsets = [0, 32], sizes = [2, 32], strides = [1, 1]} : vector<2x128xf32> to vector<2x32xf32>
    %243 = vector.extract_strided_slice %240 {offsets = [0, 96], sizes = [2, 32], strides = [1, 1]} : vector<2x128xf32> to vector<2x32xf32>
    %244 = vector.extract_strided_slice %233 {offsets = [0, 64], sizes = [2, 32], strides = [1, 1]} : vector<2x128xf32> to vector<2x32xf32>
    %245 = math.tanh %244 : vector<2x32xf32>
    %246 = arith.mulf %242, %227 : vector<2x32xf32>
    %247 = arith.mulf %241, %245 : vector<2x32xf32>
    %248 = arith.addf %246, %247 : vector<2x32xf32>
    %249 = math.tanh %248 : vector<2x32xf32>
    %250 = arith.mulf %243, %249 : vector<2x32xf32>
    %251 = vector.extract_strided_slice %184 {offsets = [6, 0], sizes = [2, 128], strides = [1, 1]} : vector<16x128xf32> to vector<2x128xf32>
    %252 = arith.truncf %250 : vector<2x32xf32> to vector<2x32xbf16>
    %cst_62 = arith.constant dense<0.000000e+00> : vector<2x128xf32>
    %253 = tpu.matmul %252, %185, %cst_62 {dimension_numbers = #tpu.dot_dimension_numbers<[1], [0], [0], [1], [0, 0, 1, 1], [], []>} : vector<2x32xbf16>, vector<32x128xbf16>, vector<2x128xf32> -> vector<2x128xf32>
    %254 = arith.addf %251, %253 : vector<2x128xf32>
    %cst_63 = arith.constant 5.000000e-01 : f32
    %255 = vector.broadcast %cst_63 : f32 to vector<2x128xf32>
    %256 = arith.mulf %255, %254 : vector<2x128xf32>
    %257 = math.tanh %256 : vector<2x128xf32>
    %cst_64 = arith.constant 1.000000e+00 : f32
    %258 = vector.broadcast %cst_64 : f32 to vector<2x128xf32>
    %259 = arith.addf %257, %258 : vector<2x128xf32>
    %cst_65 = arith.constant 5.000000e-01 : f32
    %260 = vector.broadcast %cst_65 : f32 to vector<2x128xf32>
    %261 = arith.mulf %260, %259 : vector<2x128xf32>
    %262 = vector.extract_strided_slice %261 {offsets = [0, 0], sizes = [2, 32], strides = [1, 1]} : vector<2x128xf32> to vector<2x32xf32>
    %263 = vector.extract_strided_slice %261 {offsets = [0, 32], sizes = [2, 32], strides = [1, 1]} : vector<2x128xf32> to vector<2x32xf32>
    %264 = vector.extract_strided_slice %261 {offsets = [0, 96], sizes = [2, 32], strides = [1, 1]} : vector<2x128xf32> to vector<2x32xf32>
    %265 = vector.extract_strided_slice %254 {offsets = [0, 64], sizes = [2, 32], strides = [1, 1]} : vector<2x128xf32> to vector<2x32xf32>
    %266 = math.tanh %265 : vector<2x32xf32>
    %267 = arith.mulf %263, %248 : vector<2x32xf32>
    %268 = arith.mulf %262, %266 : vector<2x32xf32>
    %269 = arith.addf %267, %268 : vector<2x32xf32>
    %270 = math.tanh %269 : vector<2x32xf32>
    %271 = arith.mulf %264, %270 : vector<2x32xf32>
    %272 = vector.extract_strided_slice %184 {offsets = [8, 0], sizes = [2, 128], strides = [1, 1]} : vector<16x128xf32> to vector<2x128xf32>
    %273 = arith.truncf %271 : vector<2x32xf32> to vector<2x32xbf16>
    %cst_66 = arith.constant dense<0.000000e+00> : vector<2x128xf32>
    %274 = tpu.matmul %273, %185, %cst_66 {dimension_numbers = #tpu.dot_dimension_numbers<[1], [0], [0], [1], [0, 0, 1, 1], [], []>} : vector<2x32xbf16>, vector<32x128xbf16>, vector<2x128xf32> -> vector<2x128xf32>
    %275 = arith.addf %272, %274 : vector<2x128xf32>
    %cst_67 = arith.constant 5.000000e-01 : f32
    %276 = vector.broadcast %cst_67 : f32 to vector<2x128xf32>
    %277 = arith.mulf %276, %275 : vector<2x128xf32>
    %278 = math.tanh %277 : vector<2x128xf32>
    %cst_68 = arith.constant 1.000000e+00 : f32
    %279 = vector.broadcast %cst_68 : f32 to vector<2x128xf32>
    %280 = arith.addf %278, %279 : vector<2x128xf32>
    %cst_69 = arith.constant 5.000000e-01 : f32
    %281 = vector.broadcast %cst_69 : f32 to vector<2x128xf32>
    %282 = arith.mulf %281, %280 : vector<2x128xf32>
    %283 = vector.extract_strided_slice %282 {offsets = [0, 0], sizes = [2, 32], strides = [1, 1]} : vector<2x128xf32> to vector<2x32xf32>
    %284 = vector.extract_strided_slice %282 {offsets = [0, 32], sizes = [2, 32], strides = [1, 1]} : vector<2x128xf32> to vector<2x32xf32>
    %285 = vector.extract_strided_slice %282 {offsets = [0, 96], sizes = [2, 32], strides = [1, 1]} : vector<2x128xf32> to vector<2x32xf32>
    %286 = vector.extract_strided_slice %275 {offsets = [0, 64], sizes = [2, 32], strides = [1, 1]} : vector<2x128xf32> to vector<2x32xf32>
    %287 = math.tanh %286 : vector<2x32xf32>
    %288 = arith.mulf %284, %269 : vector<2x32xf32>
    %289 = arith.mulf %283, %287 : vector<2x32xf32>
    %290 = arith.addf %288, %289 : vector<2x32xf32>
    %291 = math.tanh %290 : vector<2x32xf32>
    %292 = arith.mulf %285, %291 : vector<2x32xf32>
    %293 = vector.extract_strided_slice %184 {offsets = [10, 0], sizes = [2, 128], strides = [1, 1]} : vector<16x128xf32> to vector<2x128xf32>
    %294 = arith.truncf %292 : vector<2x32xf32> to vector<2x32xbf16>
    %cst_70 = arith.constant dense<0.000000e+00> : vector<2x128xf32>
    %295 = tpu.matmul %294, %185, %cst_70 {dimension_numbers = #tpu.dot_dimension_numbers<[1], [0], [0], [1], [0, 0, 1, 1], [], []>} : vector<2x32xbf16>, vector<32x128xbf16>, vector<2x128xf32> -> vector<2x128xf32>
    %296 = arith.addf %293, %295 : vector<2x128xf32>
    %cst_71 = arith.constant 5.000000e-01 : f32
    %297 = vector.broadcast %cst_71 : f32 to vector<2x128xf32>
    %298 = arith.mulf %297, %296 : vector<2x128xf32>
    %299 = math.tanh %298 : vector<2x128xf32>
    %cst_72 = arith.constant 1.000000e+00 : f32
    %300 = vector.broadcast %cst_72 : f32 to vector<2x128xf32>
    %301 = arith.addf %299, %300 : vector<2x128xf32>
    %cst_73 = arith.constant 5.000000e-01 : f32
    %302 = vector.broadcast %cst_73 : f32 to vector<2x128xf32>
    %303 = arith.mulf %302, %301 : vector<2x128xf32>
    %304 = vector.extract_strided_slice %303 {offsets = [0, 0], sizes = [2, 32], strides = [1, 1]} : vector<2x128xf32> to vector<2x32xf32>
    %305 = vector.extract_strided_slice %303 {offsets = [0, 32], sizes = [2, 32], strides = [1, 1]} : vector<2x128xf32> to vector<2x32xf32>
    %306 = vector.extract_strided_slice %303 {offsets = [0, 96], sizes = [2, 32], strides = [1, 1]} : vector<2x128xf32> to vector<2x32xf32>
    %307 = vector.extract_strided_slice %296 {offsets = [0, 64], sizes = [2, 32], strides = [1, 1]} : vector<2x128xf32> to vector<2x32xf32>
    %308 = math.tanh %307 : vector<2x32xf32>
    %309 = arith.mulf %305, %290 : vector<2x32xf32>
    %310 = arith.mulf %304, %308 : vector<2x32xf32>
    %311 = arith.addf %309, %310 : vector<2x32xf32>
    %312 = math.tanh %311 : vector<2x32xf32>
    %313 = arith.mulf %306, %312 : vector<2x32xf32>
    %314 = vector.extract_strided_slice %184 {offsets = [12, 0], sizes = [2, 128], strides = [1, 1]} : vector<16x128xf32> to vector<2x128xf32>
    %315 = arith.truncf %313 : vector<2x32xf32> to vector<2x32xbf16>
    %cst_74 = arith.constant dense<0.000000e+00> : vector<2x128xf32>
    %316 = tpu.matmul %315, %185, %cst_74 {dimension_numbers = #tpu.dot_dimension_numbers<[1], [0], [0], [1], [0, 0, 1, 1], [], []>} : vector<2x32xbf16>, vector<32x128xbf16>, vector<2x128xf32> -> vector<2x128xf32>
    %317 = arith.addf %314, %316 : vector<2x128xf32>
    %cst_75 = arith.constant 5.000000e-01 : f32
    %318 = vector.broadcast %cst_75 : f32 to vector<2x128xf32>
    %319 = arith.mulf %318, %317 : vector<2x128xf32>
    %320 = math.tanh %319 : vector<2x128xf32>
    %cst_76 = arith.constant 1.000000e+00 : f32
    %321 = vector.broadcast %cst_76 : f32 to vector<2x128xf32>
    %322 = arith.addf %320, %321 : vector<2x128xf32>
    %cst_77 = arith.constant 5.000000e-01 : f32
    %323 = vector.broadcast %cst_77 : f32 to vector<2x128xf32>
    %324 = arith.mulf %323, %322 : vector<2x128xf32>
    %325 = vector.extract_strided_slice %324 {offsets = [0, 0], sizes = [2, 32], strides = [1, 1]} : vector<2x128xf32> to vector<2x32xf32>
    %326 = vector.extract_strided_slice %324 {offsets = [0, 32], sizes = [2, 32], strides = [1, 1]} : vector<2x128xf32> to vector<2x32xf32>
    %327 = vector.extract_strided_slice %324 {offsets = [0, 96], sizes = [2, 32], strides = [1, 1]} : vector<2x128xf32> to vector<2x32xf32>
    %328 = vector.extract_strided_slice %317 {offsets = [0, 64], sizes = [2, 32], strides = [1, 1]} : vector<2x128xf32> to vector<2x32xf32>
    %329 = math.tanh %328 : vector<2x32xf32>
    %330 = arith.mulf %326, %311 : vector<2x32xf32>
    %331 = arith.mulf %325, %329 : vector<2x32xf32>
    %332 = arith.addf %330, %331 : vector<2x32xf32>
    %333 = math.tanh %332 : vector<2x32xf32>
    %334 = arith.mulf %327, %333 : vector<2x32xf32>
    %335 = vector.extract_strided_slice %184 {offsets = [14, 0], sizes = [2, 128], strides = [1, 1]} : vector<16x128xf32> to vector<2x128xf32>
    %336 = arith.truncf %334 : vector<2x32xf32> to vector<2x32xbf16>
    %cst_78 = arith.constant dense<0.000000e+00> : vector<2x128xf32>
    %337 = tpu.matmul %336, %185, %cst_78 {dimension_numbers = #tpu.dot_dimension_numbers<[1], [0], [0], [1], [0, 0, 1, 1], [], []>} : vector<2x32xbf16>, vector<32x128xbf16>, vector<2x128xf32> -> vector<2x128xf32>
    %338 = arith.addf %335, %337 : vector<2x128xf32>
    %cst_79 = arith.constant 5.000000e-01 : f32
    %339 = vector.broadcast %cst_79 : f32 to vector<2x128xf32>
    %340 = arith.mulf %339, %338 : vector<2x128xf32>
    %341 = math.tanh %340 : vector<2x128xf32>
    %cst_80 = arith.constant 1.000000e+00 : f32
    %342 = vector.broadcast %cst_80 : f32 to vector<2x128xf32>
    %343 = arith.addf %341, %342 : vector<2x128xf32>
    %cst_81 = arith.constant 5.000000e-01 : f32
    %344 = vector.broadcast %cst_81 : f32 to vector<2x128xf32>
    %345 = arith.mulf %344, %343 : vector<2x128xf32>
    %346 = vector.extract_strided_slice %345 {offsets = [0, 0], sizes = [2, 32], strides = [1, 1]} : vector<2x128xf32> to vector<2x32xf32>
    %347 = vector.extract_strided_slice %345 {offsets = [0, 32], sizes = [2, 32], strides = [1, 1]} : vector<2x128xf32> to vector<2x32xf32>
    %348 = vector.extract_strided_slice %345 {offsets = [0, 96], sizes = [2, 32], strides = [1, 1]} : vector<2x128xf32> to vector<2x32xf32>
    %349 = vector.extract_strided_slice %338 {offsets = [0, 64], sizes = [2, 32], strides = [1, 1]} : vector<2x128xf32> to vector<2x32xf32>
    %350 = math.tanh %349 : vector<2x32xf32>
    %351 = arith.mulf %347, %332 : vector<2x32xf32>
    %352 = arith.mulf %346, %350 : vector<2x32xf32>
    %353 = arith.addf %351, %352 : vector<2x32xf32>
    %354 = math.tanh %353 : vector<2x32xf32>
    %355 = arith.mulf %348, %354 : vector<2x32xf32>
    %c0_82 = arith.constant 0 : index
    %c0_83 = arith.constant 0 : index
    %356 = vector.load %arg7[%c0_82, %c0_83] : memref<32x5xf32, #tpu.memory_space<vmem>>, vector<32x5xf32>
    %cst_84 = arith.constant dense<0.000000e+00> : vector<2x5xf32>
    %357 = tpu.matmul %355, %356, %cst_84 {dimension_numbers = #tpu.dot_dimension_numbers<[1], [0], [0], [1], [0, 0, 1, 1], [], []>} : vector<2x32xf32>, vector<32x5xf32>, vector<2x5xf32> -> vector<2x5xf32>
    %c0_85 = arith.constant 0 : index
    %c0_86 = arith.constant 0 : index
    %358 = vector.load %arg8[%c0_85, %c0_86] : memref<1x5xf32, #tpu.memory_space<vmem>>, vector<1x5xf32>
    %359 = vector.broadcast %358 : vector<1x5xf32> to vector<2x5xf32>
    %360 = arith.addf %357, %359 : vector<2x5xf32>
    %cst_87 = arith.constant 5.000000e-01 : f32
    %361 = vector.broadcast %cst_87 : f32 to vector<2x5xf32>
    %362 = arith.mulf %361, %360 : vector<2x5xf32>
    %363 = math.tanh %362 : vector<2x5xf32>
    %cst_88 = arith.constant 1.000000e+00 : f32
    %364 = vector.broadcast %cst_88 : f32 to vector<2x5xf32>
    %365 = arith.addf %363, %364 : vector<2x5xf32>
    %cst_89 = arith.constant 5.000000e-01 : f32
    %366 = vector.broadcast %cst_89 : f32 to vector<2x5xf32>
    %367 = arith.mulf %366, %365 : vector<2x5xf32>
    %c0_90 = arith.constant 0 : index
    %c0_91 = arith.constant 0 : index
    %368 = vector.load %arg9[%c0_90, %c0_91] : memref<2x5xf32, #tpu.memory_space<vmem>>, vector<2x5xf32>
    tpu.vector_store %arg9[%c0_90, %c0_91], %367 {strides = array<i32>} : memref<2x5xf32, #tpu.memory_space<vmem>>, vector<2x5xf32>,
    return
  }
}

</mosaic_0001>

<llo_original>
// kernel: tpu_custom_call.1
$region0: #{tpu_custom_call.1}
  #allocation0 [shape = 'u32[]', space=smem, size = 0x4, offset = 0x4, fixed_abs, tag = 'smem constant byte address 0x4 - core index']
  #allocation1 [shape = 'u32[144,128]{1,0:T(1,128)}', space=vmem, size = 0x12000, scoped, tag = 'internal scratch']
  %s0 = inlined_call_operand.vmem [shape: f32[16,4], index: 0, kind: input, shape index: {}]
  %s1 = inlined_call_operand.vmem [shape: bf16[4,128], index: 1, kind: input, shape index: {}]
  %s2 = inlined_call_operand.vmem [shape: bf16[32,128], index: 2, kind: input, shape index: {}]
  %s3 = inlined_call_operand.vmem [shape: f32[1,128], index: 3, kind: input, shape index: {}]
  %s4 = inlined_call_operand.vmem [shape: bf16[32,128], index: 4, kind: input, shape index: {}]
  %s5 = inlined_call_operand.vmem [shape: bf16[32,128], index: 5, kind: input, shape index: {}]
  %s6 = inlined_call_operand.vmem [shape: f32[1,128], index: 6, kind: input, shape index: {}]
  %s7 = inlined_call_operand.vmem [shape: f32[32,5], index: 7, kind: input, shape index: {}]
  %s8 = inlined_call_operand.vmem [shape: f32[1,5], index: 8, kind: input, shape index: {}]
  %s9 = inlined_call_operand.hbm [shape: f32[2,5], index: 9, kind: output, shape index: {}]
  %s10 = sld [smem:[#allocation0]]
  $region46: #{tpu_custom_call.1} parent=0
    _
  %s12 = ssub.s32 1, %s10
  %s13 = scalar_select 0, %s12, %s10
  $region1: #{tpu_custom_call.1} parent=0
    #allocation2 [shape = 'u8[1024]{0}', space=vmem, size = 0x400, scoped, tag = 'output window, operand 0, single buffered']
    #allocation3 [shape = 's32[1]{0}', space=sflag, size = 0x4, scoped, tag = 'scoped memory for tpu_custom_call.1']
    %14 = vsyncpa [#allocation3], 0
    // Predicated region
    $region2: #{tpu_custom_call.1} parent=1 // pred_check
      _
    $region3: #{tpu_custom_call.1} parent=1 // pred_check_branch
      %16 = sbr.rel (0) target = $region5
    $region4: #{tpu_custom_call.1} parent=1 // pred_region
      _
    $region5: #{tpu_custom_call.1} parent=1 // pred_fallthru
      _
    // Predicated region
    $region6: #{tpu_custom_call.1} parent=1 // pred_check
      _
    $region7: #{tpu_custom_call.1} parent=1 // pred_check_branch
      %18 = sbr.rel (0) target = $region9
    $region8: #{tpu_custom_call.1} parent=1 // pred_region
      _
    $region9: #{tpu_custom_call.1} parent=1 // pred_fallthru
      _
    // Predicated region
    $region10: #{tpu_custom_call.1} parent=1 // pred_check
      _
    $region11: #{tpu_custom_call.1} parent=1 // pred_check_branch
      %20 = sbr.rel (0) target = $region13
    $region12: #{tpu_custom_call.1} parent=1 // pred_region
      _
    $region13: #{tpu_custom_call.1} parent=1 // pred_fallthru
      _
    // Predicated region
    $region14: #{tpu_custom_call.1} parent=1 // pred_check
      _
    $region15: #{tpu_custom_call.1} parent=1 // pred_check_branch
      %22 = sbr.rel (0) target = $region17
    $region16: #{tpu_custom_call.1} parent=1 // pred_region
      _
    $region17: #{tpu_custom_call.1} parent=1 // pred_fallthru
      _
    // Predicated region
    $region18: #{tpu_custom_call.1} parent=1 // pred_check
      _
    $region19: #{tpu_custom_call.1} parent=1 // pred_check_branch
      %24 = sbr.rel (0) target = $region21
    $region20: #{tpu_custom_call.1} parent=1 // pred_region
      _
    $region21: #{tpu_custom_call.1} parent=1 // pred_fallthru
      _
    // Predicated region
    $region22: #{tpu_custom_call.1} parent=1 // pred_check
      _
    $region23: #{tpu_custom_call.1} parent=1 // pred_check_branch
      %26 = sbr.rel (0) target = $region25
    $region24: #{tpu_custom_call.1} parent=1 // pred_region
      _
    $region25: #{tpu_custom_call.1} parent=1 // pred_fallthru
      _
    // Predicated region
    $region26: #{tpu_custom_call.1} parent=1 // pred_check
      _
    $region27: #{tpu_custom_call.1} parent=1 // pred_check_branch
      %28 = sbr.rel (0) target = $region29
    $region28: #{tpu_custom_call.1} parent=1 // pred_region
      _
    $region29: #{tpu_custom_call.1} parent=1 // pred_fallthru
      _
    // Predicated region
    $region30: #{tpu_custom_call.1} parent=1 // pred_check
      _
    $region31: #{tpu_custom_call.1} parent=1 // pred_check_branch
      %30 = sbr.rel (0) target = $region33
    $region32: #{tpu_custom_call.1} parent=1 // pred_region
      _
    $region33: #{tpu_custom_call.1} parent=1 // pred_fallthru
      _
    // Predicated region
    $region34: #{tpu_custom_call.1} parent=1 // pred_check
      _
    $region35: #{tpu_custom_call.1} parent=1 // pred_check_branch
      %32 = sbr.rel (0) target = $region37
    $region36: #{tpu_custom_call.1} parent=1 // pred_region
      _
    $region37: #{tpu_custom_call.1} parent=1 // pred_fallthru
      _
    %v34 = vld [vmem:[%s0] sm:$0xff]
    %v35 = vld [vmem:[%s0 + $0x8] sm:$0xff]
    %v36 = vpack.c.bf16 %v35, %v34
    %v37 = vld [vmem:[%s1] sm:$0x3]
    %v38 = vld [vmem:[%s3] sm:$0x1]
    %v40 = vlaneseq
    %v41 = vshrl.u32 %v40, 7
    %v42 = vsub.s32 0, %v41
    %v43 = vrot.slane %v38, %v42
    %vm45 = vcmask 31744
    %v47 = vsel %vm45, %v36, 0
    %vm49 = vcmask 1041408
    %v51 = vsel %vm49, %v37, 0
    %53 = vmatprep.subr.bf16.mxu0 0
    %54 = vmatpush1.bf16.msra.mxu0 0
    %55 = vmatprep.subr.bf16.mxu0 0
    %56 = vmatpush1.bf16.msra.mxu0 0
    %57 = vmatprep.subr.bf16.mxu0 0
    %58 = vmatpush1.bf16.msra.mxu0 0
    %59 = vmatprep.subr.bf16.mxu0 0
    %60 = vmatpush1.bf16.msra.mxu0 0
    %61 = vmatprep.subr.bf16.mxu0 0
    %62 = vmatpush1.bf16.msra.mxu0 0
    %63 = vmatprep.subr.bf16.mxu0 0
    %64 = vmatpush1.bf16.msra.mxu0 0
    %65 = vmatprep.subr.bf16.mxu0 0
    %66 = vmatpush1.bf16.msra.mxu0 0
    %67 = vmatprep.subr.bf16.mxu0 0
    %68 = vmatpush1.bf16.msra.mxu0 %v51
    %69 = vmatprep.subr.bf16.mxu0 0
    %70 = vmatpush2.bf16.msra.mxu0 0
    %71 = vmatprep.subr.bf16.mxu0 0
    %72 = vmatpush2.bf16.msra.mxu0 0
    %73 = vmatprep.subr.bf16.mxu0 0
    %74 = vmatpush2.bf16.msra.mxu0 0
    %75 = vmatprep.subr.bf16.mxu0 0
    %76 = vmatpush2.bf16.msra.mxu0 0
    %77 = vmatprep.subr.bf16.mxu0 0
    %78 = vmatpush2.bf16.msra.mxu0 0
    %79 = vmatprep.subr.bf16.mxu0 0
    %80 = vmatpush2.bf16.msra.mxu0 0
    %81 = vmatprep.subr.bf16.mxu0 0
    %82 = vmatpush2.bf16.msra.mxu0 0
    %83 = vmatprep.subr.bf16.mxu0 0
    %84 = vmatpush2.bf16.msra.mxu0 0
    %85 = vmatprep.mubr.bf16.mxu0 0
    %86 = vmatmul.mubr.bf16.gmra.mxu0 %v47
    %v87 = vpop.f32.mrf.mxu0
    %v88 = vadd.f32 %v43, %v87
    %v89 = vpop.f32.mrf.mxu0
    %v90 = vpop.f32.mrf.mxu0
    %v91 = vadd.f32 %v43, %v90
    %v92 = vpop.f32.mrf.mxu0
    %93 = vdwg.mxu0
    %v94 = vld [vmem:[%s2] sm:$0xf]
    %v95 = vld [vmem:[%s2 + $0x4] sm:$0xf]
    %v96 = vld [vmem:[%s2 + $0x8] sm:$0xf]
    %v97 = vld [vmem:[%s2 + $0xc] sm:$0xf]
    %v102 = vunpack.c.l.b16 %v94
    %v103 = vunpack.c.l.b16 %v95
    %v104 = vunpack.c.l.b16 %v96
    %v105 = vunpack.c.l.b16 %v97
    %v106 = vpack.c.b16 %v103, %v102
    %v107 = vpack.c.b16 %v105, %v104
    %vm110 = vcmask 261120
    %v112 = vsel %vm110, 0, 0
    %114 = vmatprep.subr.bf16.mxu0 0
    %115 = vmatpush1.bf16.msra.mxu0 0
    %116 = vmatprep.subr.bf16.mxu0 0
    %117 = vmatpush1.bf16.msra.mxu0 0
    %118 = vmatprep.subr.bf16.mxu0 0
    %119 = vmatpush1.bf16.msra.mxu0 0
    %120 = vmatprep.subr.bf16.mxu0 0
    %121 = vmatpush1.bf16.msra.mxu0 0
    %122 = vmatprep.subr.bf16.mxu0 0
    %123 = vmatpush1.bf16.msra.mxu0 0
    %124 = vmatprep.subr.bf16.mxu0 0
    %125 = vmatpush1.bf16.msra.mxu0 0
    %126 = vmatprep.subr.bf16.mxu0 0
    %127 = vmatpush1.bf16.msra.mxu0 %v107
    %128 = vmatprep.subr.bf16.mxu0 0
    %129 = vmatpush1.bf16.msra.mxu0 %v106
    %130 = vmatprep.subr.bf16.mxu0 0
    %131 = vmatpush2.bf16.msra.mxu0 0
    %132 = vmatprep.subr.bf16.mxu0 0
    %133 = vmatpush2.bf16.msra.mxu0 0
    %134 = vmatprep.subr.bf16.mxu0 0
    %135 = vmatpush2.bf16.msra.mxu0 0
    %136 = vmatprep.subr.bf16.mxu0 0
    %137 = vmatpush2.bf16.msra.mxu0 0
    %138 = vmatprep.subr.bf16.mxu0 0
    %139 = vmatpush2.bf16.msra.mxu0 0
    %140 = vmatprep.subr.bf16.mxu0 0
    %141 = vmatpush2.bf16.msra.mxu0 0
    %142 = vmatprep.subr.bf16.mxu0 0
    %143 = vmatpush2.bf16.msra.mxu0 0
    %144 = vmatprep.subr.bf16.mxu0 0
    %145 = vmatpush2.bf16.msra.mxu0 0
    %146 = vmatprep.mubr.bf16.mxu0 0
    %147 = vmatmul.mubr.bf16.gmra.mxu0 %v112
    %v148 = vpop.f32.mrf.mxu0
    %v149 = vadd.f32 0.0, %v148
    %v150 = vpop.f32.mrf.mxu0
    %v151 = vpop.f32.mrf.mxu0
    %v152 = vpop.f32.mrf.mxu0
    %153 = vdwg.mxu0
    %v154 = vadd.f32 %v88, %v149
    %v155 = vmul.f32 %v154, 0.5
    %v156 = vtanh.pop %v155
    %v157 = vadd.f32 %v156, 1.0
    %v158 = vmul.f32 %v157, 0.5
    %v159 = vtanh.pop %v154
    %v160 = vmul.f32 %v158, 0.0
    %162 = vrot.lane.b32.xlu0 %v159, 64
    %v163 = vpop.permute.xlu0 %162
    %v165 = vmul.f32 %v158, %v163
    %167 = vrot.lane.b32.xlu0 %v165, 32
    %v168 = vpop.permute.xlu0 %167
    %v170 = vadd.f32 %v160, %v168
    %v171 = vtanh.pop %v170
    %173 = vrot.lane.b32.xlu0 %v171, 64
    %v174 = vpop.permute.xlu0 %173
    %v176 = vmul.f32 %v158, %v174
    %v177 = vpack.c.bf16 %v176, %v176
    %179 = vrot.lane.b32.xlu0 %v177, 32
    %v180 = vpop.permute.xlu0 %179
    %v182 = vsel %vm110, %v180, 0
    %184 = vmatprep.subr.bf16.mxu0 0
    %185 = vmatpush1.bf16.msra.mxu0 0
    %186 = vmatprep.subr.bf16.mxu0 0
    %187 = vmatpush1.bf16.msra.mxu0 0
    %188 = vmatprep.subr.bf16.mxu0 0
    %189 = vmatpush1.bf16.msra.mxu0 0
    %190 = vmatprep.subr.bf16.mxu0 0
    %191 = vmatpush1.bf16.msra.mxu0 0
    %192 = vmatprep.subr.bf16.mxu0 0
    %193 = vmatpush1.bf16.msra.mxu0 0
    %194 = vmatprep.subr.bf16.mxu0 0
    %195 = vmatpush1.bf16.msra.mxu0 0
    %196 = vmatprep.subr.bf16.mxu0 0
    %197 = vmatpush1.bf16.msra.mxu0 %v107
    %198 = vmatprep.subr.bf16.mxu0 0
    %199 = vmatpush1.bf16.msra.mxu0 %v106
    %200 = vmatprep.subr.bf16.mxu0 0
    %201 = vmatpush2.bf16.msra.mxu0 0
    %202 = vmatprep.subr.bf16.mxu0 0
    %203 = vmatpush2.bf16.msra.mxu0 0
    %204 = vmatprep.subr.bf16.mxu0 0
    %205 = vmatpush2.bf16.msra.mxu0 0
    %206 = vmatprep.subr.bf16.mxu0 0
    %207 = vmatpush2.bf16.msra.mxu0 0
    %208 = vmatprep.subr.bf16.mxu0 0
    %209 = vmatpush2.bf16.msra.mxu0 0
    %210 = vmatprep.subr.bf16.mxu0 0
    %211 = vmatpush2.bf16.msra.mxu0 0
    %212 = vmatprep.subr.bf16.mxu0 0
    %213 = vmatpush2.bf16.msra.mxu0 0
    %214 = vmatprep.subr.bf16.mxu0 0
    %215 = vmatpush2.bf16.msra.mxu0 0
    %216 = vmatprep.mubr.bf16.mxu0 0
    %217 = vmatmul.mubr.bf16.gmra.mxu0 %v182
    %v218 = vpop.f32.mrf.mxu0
    %v219 = vadd.f32 0.0, %v218
    %v220 = vpop.f32.mrf.mxu0
    %v221 = vpop.f32.mrf.mxu0
    %v222 = vpop.f32.mrf.mxu0
    %223 = vdwg.mxu0
    %v225 = vrot.slane %v219, 6
    %v227 = vadd.f32 %v88, %v225
    %v228 = vmul.f32 %v227, 0.5
    %v229 = vtanh.pop %v228
    %v230 = vadd.f32 %v229, 1.0
    %v231 = vmul.f32 %v230, 0.5
    %v232 = vtanh.pop %v227
    %v234 = vrot.slane %v170, 6
    %v236 = vmul.f32 %v231, %v234
    %238 = vrot.lane.b32.xlu0 %v232, 64
    %v239 = vpop.permute.xlu0 %238
    %v241 = vmul.f32 %v231, %v239
    %243 = vrot.lane.b32.xlu0 %v241, 32
    %v244 = vpop.permute.xlu0 %243
    %v246 = vadd.f32 %v236, %v244
    %v247 = vtanh.pop %v246
    %249 = vrot.lane.b32.xlu0 %v247, 64
    %v250 = vpop.permute.xlu0 %249
    %v252 = vmul.f32 %v231, %v250
    %v253 = vpack.c.bf16 %v252, %v252
    %v255 = vrot.slane %v253, 1
    %256 = vrot.lane.b32.xlu0 %v255, 32
    %v257 = vpop.permute.xlu0 %256
    %v259 = vsel %vm110, %v257, 0
    %261 = vmatprep.subr.bf16.mxu0 0
    %262 = vmatpush1.bf16.msra.mxu0 0
    %263 = vmatprep.subr.bf16.mxu0 0
    %264 = vmatpush1.bf16.msra.mxu0 0
    %265 = vmatprep.subr.bf16.mxu0 0
    %266 = vmatpush1.bf16.msra.mxu0 0
    %267 = vmatprep.subr.bf16.mxu0 0
    %268 = vmatpush1.bf16.msra.mxu0 0
    %269 = vmatprep.subr.bf16.mxu0 0
    %270 = vmatpush1.bf16.msra.mxu0 0
    %271 = vmatprep.subr.bf16.mxu0 0
    %272 = vmatpush1.bf16.msra.mxu0 0
    %273 = vmatprep.subr.bf16.mxu0 0
    %274 = vmatpush1.bf16.msra.mxu0 %v107
    %275 = vmatprep.subr.bf16.mxu0 0
    %276 = vmatpush1.bf16.msra.mxu0 %v106
    %277 = vmatprep.subr.bf16.mxu0 0
    %278 = vmatpush2.bf16.msra.mxu0 0
    %279 = vmatprep.subr.bf16.mxu0 0
    %280 = vmatpush2.bf16.msra.mxu0 0
    %281 = vmatprep.subr.bf16.mxu0 0
    %282 = vmatpush2.bf16.msra.mxu0 0
    %283 = vmatprep.subr.bf16.mxu0 0
    %284 = vmatpush2.bf16.msra.mxu0 0
    %285 = vmatprep.subr.bf16.mxu0 0
    %286 = vmatpush2.bf16.msra.mxu0 0
    %287 = vmatprep.subr.bf16.mxu0 0
    %288 = vmatpush2.bf16.msra.mxu0 0
    %289 = vmatprep.subr.bf16.mxu0 0
    %290 = vmatpush2.bf16.msra.mxu0 0
    %291 = vmatprep.subr.bf16.mxu0 0
    %292 = vmatpush2.bf16.msra.mxu0 0
    %293 = vmatprep.mubr.bf16.mxu0 0
    %294 = vmatmul.mubr.bf16.gmra.mxu0 %v259
    %v295 = vpop.f32.mrf.mxu0
    %v296 = vadd.f32 0.0, %v295
    %v297 = vpop.f32.mrf.mxu0
    %v298 = vpop.f32.mrf.mxu0
    %v299 = vpop.f32.mrf.mxu0
    %300 = vdwg.mxu0
    %v302 = vrot.slane %v296, 4
    %v304 = vadd.f32 %v88, %v302
    %v305 = vmul.f32 %v304, 0.5
    %v306 = vtanh.pop %v305
    %v307 = vadd.f32 %v306, 1.0
    %v308 = vmul.f32 %v307, 0.5
    %v309 = vtanh.pop %v304
    %v311 = vrot.slane %v246, 6
    %v313 = vmul.f32 %v308, %v311
    %315 = vrot.lane.b32.xlu0 %v309, 64
    %v316 = vpop.permute.xlu0 %315
    %v318 = vmul.f32 %v308, %v316
    %320 = vrot.lane.b32.xlu0 %v318, 32
    %v321 = vpop.permute.xlu0 %320
    %v323 = vadd.f32 %v313, %v321
    %v324 = vtanh.pop %v323
    %326 = vrot.lane.b32.xlu0 %v324, 64
    %v327 = vpop.permute.xlu0 %326
    %v329 = vmul.f32 %v308, %v327
    %v330 = vpack.c.bf16 %v329, %v329
    %v332 = vrot.slane %v330, 2
    %333 = vrot.lane.b32.xlu0 %v332, 32
    %v334 = vpop.permute.xlu0 %333
    %v336 = vsel %vm110, %v334, 0
    %338 = vmatprep.subr.bf16.mxu0 0
    %339 = vmatpush1.bf16.msra.mxu0 0
    %340 = vmatprep.subr.bf16.mxu0 0
    %341 = vmatpush1.bf16.msra.mxu0 0
    %342 = vmatprep.subr.bf16.mxu0 0
    %343 = vmatpush1.bf16.msra.mxu0 0
    %344 = vmatprep.subr.bf16.mxu0 0
    %345 = vmatpush1.bf16.msra.mxu0 0
    %346 = vmatprep.subr.bf16.mxu0 0
    %347 = vmatpush1.bf16.msra.mxu0 0
    %348 = vmatprep.subr.bf16.mxu0 0
    %349 = vmatpush1.bf16.msra.mxu0 0
    %350 = vmatprep.subr.bf16.mxu0 0
    %351 = vmatpush1.bf16.msra.mxu0 %v107
    %352 = vmatprep.subr.bf16.mxu0 0
    %353 = vmatpush1.bf16.msra.mxu0 %v106
    %354 = vmatprep.subr.bf16.mxu0 0
    %355 = vmatpush2.bf16.msra.mxu0 0
    %356 = vmatprep.subr.bf16.mxu0 0
    %357 = vmatpush2.bf16.msra.mxu0 0
    %358 = vmatprep.subr.bf16.mxu0 0
    %359 = vmatpush2.bf16.msra.mxu0 0
    %360 = vmatprep.subr.bf16.mxu0 0
    %361 = vmatpush2.bf16.msra.mxu0 0
    %362 = vmatprep.subr.bf16.mxu0 0
    %363 = vmatpush2.bf16.msra.mxu0 0
    %364 = vmatprep.subr.bf16.mxu0 0
    %365 = vmatpush2.bf16.msra.mxu0 0
    %366 = vmatprep.subr.bf16.mxu0 0
    %367 = vmatpush2.bf16.msra.mxu0 0
    %368 = vmatprep.subr.bf16.mxu0 0
    %369 = vmatpush2.bf16.msra.mxu0 0
    %370 = vmatprep.mubr.bf16.mxu0 0
    %371 = vmatmul.mubr.bf16.gmra.mxu0 %v336
    %v372 = vpop.f32.mrf.mxu0
    %v373 = vadd.f32 0.0, %v372
    %v374 = vpop.f32.mrf.mxu0
    %v375 = vpop.f32.mrf.mxu0
    %v376 = vpop.f32.mrf.mxu0
    %377 = vdwg.mxu0
    %v379 = vrot.slane %v373, 2
    %v381 = vadd.f32 %v88, %v379
    %v382 = vmul.f32 %v381, 0.5
    %v383 = vtanh.pop %v382
    %v384 = vadd.f32 %v383, 1.0
    %v385 = vmul.f32 %v384, 0.5
    %v386 = vtanh.pop %v381
    %v388 = vrot.slane %v323, 6
    %v390 = vmul.f32 %v385, %v388
    %392 = vrot.lane.b32.xlu0 %v386, 64
    %v393 = vpop.permute.xlu0 %392
    %v395 = vmul.f32 %v385, %v393
    %397 = vrot.lane.b32.xlu0 %v395, 32
    %v398 = vpop.permute.xlu0 %397
    %v400 = vadd.f32 %v390, %v398
    %v401 = vtanh.pop %v400
    %403 = vrot.lane.b32.xlu0 %v401, 64
    %v404 = vpop.permute.xlu0 %403
    %v406 = vmul.f32 %v385, %v404
    %v407 = vpack.c.bf16 %v406, %v406
    %v409 = vrot.slane %v407, 3
    %410 = vrot.lane.b32.xlu0 %v409, 32
    %v411 = vpop.permute.xlu0 %410
    %v413 = vsel %vm110, %v411, 0
    %415 = vmatprep.subr.bf16.mxu0 0
    %416 = vmatpush1.bf16.msra.mxu0 0
    %417 = vmatprep.subr.bf16.mxu0 0
    %418 = vmatpush1.bf16.msra.mxu0 0
    %419 = vmatprep.subr.bf16.mxu0 0
    %420 = vmatpush1.bf16.msra.mxu0 0
    %421 = vmatprep.subr.bf16.mxu0 0
    %422 = vmatpush1.bf16.msra.mxu0 0
    %423 = vmatprep.subr.bf16.mxu0 0
    %424 = vmatpush1.bf16.msra.mxu0 0
    %425 = vmatprep.subr.bf16.mxu0 0
    %426 = vmatpush1.bf16.msra.mxu0 0
    %427 = vmatprep.subr.bf16.mxu0 0
    %428 = vmatpush1.bf16.msra.mxu0 %v107
    %429 = vmatprep.subr.bf16.mxu0 0
    %430 = vmatpush1.bf16.msra.mxu0 %v106
    %431 = vmatprep.subr.bf16.mxu0 0
    %432 = vmatpush2.bf16.msra.mxu0 0
    %433 = vmatprep.subr.bf16.mxu0 0
    %434 = vmatpush2.bf16.msra.mxu0 0
    %435 = vmatprep.subr.bf16.mxu0 0
    %436 = vmatpush2.bf16.msra.mxu0 0
    %437 = vmatprep.subr.bf16.mxu0 0
    %438 = vmatpush2.bf16.msra.mxu0 0
    %439 = vmatprep.subr.bf16.mxu0 0
    %440 = vmatpush2.bf16.msra.mxu0 0
    %441 = vmatprep.subr.bf16.mxu0 0
    %442 = vmatpush2.bf16.msra.mxu0 0
    %443 = vmatprep.subr.bf16.mxu0 0
    %444 = vmatpush2.bf16.msra.mxu0 0
    %445 = vmatprep.subr.bf16.mxu0 0
    %446 = vmatpush2.bf16.msra.mxu0 0
    %447 = vmatprep.mubr.bf16.mxu0 0
    %448 = vmatmul.mubr.bf16.gmra.mxu0 %v413
    %v449 = vpop.f32.mrf.mxu0
    %v450 = vadd.f32 0.0, %v449
    %v451 = vpop.f32.mrf.mxu0
    %v452 = vpop.f32.mrf.mxu0
    %v453 = vpop.f32.mrf.mxu0
    %454 = vdwg.mxu0
    %v455 = vadd.f32 %v91, %v450
    %v456 = vmul.f32 %v455, 0.5
    %v457 = vtanh.pop %v456
    %v458 = vadd.f32 %v457, 1.0
    %v459 = vmul.f32 %v458, 0.5
    %v460 = vtanh.pop %v455
    %v462 = vrot.slane %v400, 6
    %v464 = vmul.f32 %v459, %v462
    %466 = vrot.lane.b32.xlu0 %v460, 64
    %v467 = vpop.permute.xlu0 %466
    %v469 = vmul.f32 %v459, %v467
    %471 = vrot.lane.b32.xlu0 %v469, 32
    %v472 = vpop.permute.xlu0 %471
    %v474 = vadd.f32 %v464, %v472
    %v475 = vtanh.pop %v474
    %477 = vrot.lane.b32.xlu0 %v475, 64
    %v478 = vpop.permute.xlu0 %477
    %v480 = vmul.f32 %v459, %v478
    %v481 = vpack.c.bf16 %v480, %v480
    %483 = vrot.lane.b32.xlu0 %v481, 32
    %v484 = vpop.permute.xlu0 %483
    %v486 = vsel %vm110, %v484, 0
    %488 = vmatprep.subr.bf16.mxu0 0
    %489 = vmatpush1.bf16.msra.mxu0 0
    %490 = vmatprep.subr.bf16.mxu0 0
    %491 = vmatpush1.bf16.msra.mxu0 0
    %492 = vmatprep.subr.bf16.mxu0 0
    %493 = vmatpush1.bf16.msra.mxu0 0
    %494 = vmatprep.subr.bf16.mxu0 0
    %495 = vmatpush1.bf16.msra.mxu0 0
    %496 = vmatprep.subr.bf16.mxu0 0
    %497 = vmatpush1.bf16.msra.mxu0 0
    %498 = vmatprep.subr.bf16.mxu0 0
    %499 = vmatpush1.bf16.msra.mxu0 0
    %500 = vmatprep.subr.bf16.mxu0 0
    %501 = vmatpush1.bf16.msra.mxu0 %v107
    %502 = vmatprep.subr.bf16.mxu0 0
    %503 = vmatpush1.bf16.msra.mxu0 %v106
    %504 = vmatprep.subr.bf16.mxu0 0
    %505 = vmatpush2.bf16.msra.mxu0 0
    %506 = vmatprep.subr.bf16.mxu0 0
    %507 = vmatpush2.bf16.msra.mxu0 0
    %508 = vmatprep.subr.bf16.mxu0 0
    %509 = vmatpush2.bf16.msra.mxu0 0
    %510 = vmatprep.subr.bf16.mxu0 0
    %511 = vmatpush2.bf16.msra.mxu0 0
    %512 = vmatprep.subr.bf16.mxu0 0
    %513 = vmatpush2.bf16.msra.mxu0 0
    %514 = vmatprep.subr.bf16.mxu0 0
    %515 = vmatpush2.bf16.msra.mxu0 0
    %516 = vmatprep.subr.bf16.mxu0 0
    %517 = vmatpush2.bf16.msra.mxu0 0
    %518 = vmatprep.subr.bf16.mxu0 0
    %519 = vmatpush2.bf16.msra.mxu0 0
    %520 = vmatprep.mubr.bf16.mxu0 0
    %521 = vmatmul.mubr.bf16.gmra.mxu0 %v486
    %v522 = vpop.f32.mrf.mxu0
    %v523 = vadd.f32 0.0, %v522
    %v524 = vpop.f32.mrf.mxu0
    %v525 = vpop.f32.mrf.mxu0
    %v526 = vpop.f32.mrf.mxu0
    %527 = vdwg.mxu0
    %v529 = vrot.slane %v523, 6
    %v531 = vadd.f32 %v91, %v529
    %v532 = vmul.f32 %v531, 0.5
    %v533 = vtanh.pop %v532
    %v534 = vadd.f32 %v533, 1.0
    %v535 = vmul.f32 %v534, 0.5
    %v536 = vtanh.pop %v531
    %v538 = vrot.slane %v474, 6
    %v540 = vmul.f32 %v535, %v538
    %542 = vrot.lane.b32.xlu0 %v536, 64
    %v543 = vpop.permute.xlu0 %542
    %v545 = vmul.f32 %v535, %v543
    %547 = vrot.lane.b32.xlu0 %v545, 32
    %v548 = vpop.permute.xlu0 %547
    %v550 = vadd.f32 %v540, %v548
    %v551 = vtanh.pop %v550
    %553 = vrot.lane.b32.xlu0 %v551, 64
    %v554 = vpop.permute.xlu0 %553
    %v556 = vmul.f32 %v535, %v554
    %v557 = vpack.c.bf16 %v556, %v556
    %v559 = vrot.slane %v557, 1
    %560 = vrot.lane.b32.xlu0 %v559, 32
    %v561 = vpop.permute.xlu0 %560
    %v563 = vsel %vm110, %v561, 0
    %565 = vmatprep.subr.bf16.mxu0 0
    %566 = vmatpush1.bf16.msra.mxu0 0
    %567 = vmatprep.subr.bf16.mxu0 0
    %568 = vmatpush1.bf16.msra.mxu0 0
    %569 = vmatprep.subr.bf16.mxu0 0
    %570 = vmatpush1.bf16.msra.mxu0 0
    %571 = vmatprep.subr.bf16.mxu0 0
    %572 = vmatpush1.bf16.msra.mxu0 0
    %573 = vmatprep.subr.bf16.mxu0 0
    %574 = vmatpush1.bf16.msra.mxu0 0
    %575 = vmatprep.subr.bf16.mxu0 0
    %576 = vmatpush1.bf16.msra.mxu0 0
    %577 = vmatprep.subr.bf16.mxu0 0
    %578 = vmatpush1.bf16.msra.mxu0 %v107
    %579 = vmatprep.subr.bf16.mxu0 0
    %580 = vmatpush1.bf16.msra.mxu0 %v106
    %581 = vmatprep.subr.bf16.mxu0 0
    %582 = vmatpush2.bf16.msra.mxu0 0
    %583 = vmatprep.subr.bf16.mxu0 0
    %584 = vmatpush2.bf16.msra.mxu0 0
    %585 = vmatprep.subr.bf16.mxu0 0
    %586 = vmatpush2.bf16.msra.mxu0 0
    %587 = vmatprep.subr.bf16.mxu0 0
    %588 = vmatpush2.bf16.msra.mxu0 0
    %589 = vmatprep.subr.bf16.mxu0 0
    %590 = vmatpush2.bf16.msra.mxu0 0
    %591 = vmatprep.subr.bf16.mxu0 0
    %592 = vmatpush2.bf16.msra.mxu0 0
    %593 = vmatprep.subr.bf16.mxu0 0
    %594 = vmatpush2.bf16.msra.mxu0 0
    %595 = vmatprep.subr.bf16.mxu0 0
    %596 = vmatpush2.bf16.msra.mxu0 0
    %597 = vmatprep.mubr.bf16.mxu0 0
    %598 = vmatmul.mubr.bf16.gmra.mxu0 %v563
    %v599 = vpop.f32.mrf.mxu0
    %v600 = vadd.f32 0.0, %v599
    %v601 = vpop.f32.mrf.mxu0
    %v602 = vpop.f32.mrf.mxu0
    %v603 = vpop.f32.mrf.mxu0
    %604 = vdwg.mxu0
    %v606 = vrot.slane %v600, 4
    %v608 = vadd.f32 %v91, %v606
    %v609 = vmul.f32 %v608, 0.5
    %v610 = vtanh.pop %v609
    %v611 = vadd.f32 %v610, 1.0
    %v612 = vmul.f32 %v611, 0.5
    %v613 = vtanh.pop %v608
    %v615 = vrot.slane %v550, 6
    %v617 = vmul.f32 %v612, %v615
    %619 = vrot.lane.b32.xlu0 %v613, 64
    %v620 = vpop.permute.xlu0 %619
    %v622 = vmul.f32 %v612, %v620
    %624 = vrot.lane.b32.xlu0 %v622, 32
    %v625 = vpop.permute.xlu0 %624
    %v627 = vadd.f32 %v617, %v625
    %v628 = vtanh.pop %v627
    %630 = vrot.lane.b32.xlu0 %v628, 64
    %v631 = vpop.permute.xlu0 %630
    %v633 = vmul.f32 %v612, %v631
    %v634 = vpack.c.bf16 %v633, %v633
    %v636 = vrot.slane %v634, 2
    %637 = vrot.lane.b32.xlu0 %v636, 32
    %v638 = vpop.permute.xlu0 %637
    %v640 = vsel %vm110, %v638, 0
    %642 = vmatprep.subr.bf16.mxu0 0
    %643 = vmatpush1.bf16.msra.mxu0 0
    %644 = vmatprep.subr.bf16.mxu0 0
    %645 = vmatpush1.bf16.msra.mxu0 0
    %646 = vmatprep.subr.bf16.mxu0 0
    %647 = vmatpush1.bf16.msra.mxu0 0
    %648 = vmatprep.subr.bf16.mxu0 0
    %649 = vmatpush1.bf16.msra.mxu0 0
    %650 = vmatprep.subr.bf16.mxu0 0
    %651 = vmatpush1.bf16.msra.mxu0 0
    %652 = vmatprep.subr.bf16.mxu0 0
    %653 = vmatpush1.bf16.msra.mxu0 0
    %654 = vmatprep.subr.bf16.mxu0 0
    %655 = vmatpush1.bf16.msra.mxu0 %v107
    %656 = vmatprep.subr.bf16.mxu0 0
    %657 = vmatpush1.bf16.msra.mxu0 %v106
    %658 = vmatprep.subr.bf16.mxu0 0
    %659 = vmatpush2.bf16.msra.mxu0 0
    %660 = vmatprep.subr.bf16.mxu0 0
    %661 = vmatpush2.bf16.msra.mxu0 0
    %662 = vmatprep.subr.bf16.mxu0 0
    %663 = vmatpush2.bf16.msra.mxu0 0
    %664 = vmatprep.subr.bf16.mxu0 0
    %665 = vmatpush2.bf16.msra.mxu0 0
    %666 = vmatprep.subr.bf16.mxu0 0
    %667 = vmatpush2.bf16.msra.mxu0 0
    %668 = vmatprep.subr.bf16.mxu0 0
    %669 = vmatpush2.bf16.msra.mxu0 0
    %670 = vmatprep.subr.bf16.mxu0 0
    %671 = vmatpush2.bf16.msra.mxu0 0
    %672 = vmatprep.subr.bf16.mxu0 0
    %673 = vmatpush2.bf16.msra.mxu0 0
    %674 = vmatprep.mubr.bf16.mxu0 0
    %675 = vmatmul.mubr.bf16.gmra.mxu0 %v640
    %v676 = vpop.f32.mrf.mxu0
    %v677 = vadd.f32 0.0, %v676
    %v678 = vpop.f32.mrf.mxu0
    %v679 = vpop.f32.mrf.mxu0
    %v680 = vpop.f32.mrf.mxu0
    %681 = vdwg.mxu0
    %v683 = vrot.slane %v677, 2
    %v685 = vadd.f32 %v91, %v683
    %v686 = vmul.f32 %v685, 0.5
    %v687 = vtanh.pop %v686
    %v688 = vadd.f32 %v687, 1.0
    %v689 = vmul.f32 %v688, 0.5
    %v690 = vtanh.pop %v685
    %v692 = vrot.slane %v627, 6
    %v694 = vmul.f32 %v689, %v692
    %696 = vrot.lane.b32.xlu0 %v690, 64
    %v697 = vpop.permute.xlu0 %696
    %v699 = vmul.f32 %v689, %v697
    %701 = vrot.lane.b32.xlu0 %v699, 32
    %v702 = vpop.permute.xlu0 %701
    %v704 = vadd.f32 %v694, %v702
    %v705 = vtanh.pop %v704
    %707 = vrot.lane.b32.xlu0 %v705, 64
    %v708 = vpop.permute.xlu0 %707
    %v710 = vmul.f32 %v689, %v708
    %v711 = vsel %vm49, %v176, %v252
    %vm712 = vcmask 1043456
    %v713 = vsel %vm712, %v711, %v329
    %vm714 = vcmask 1045504
    %v715 = vsel %vm714, %v713, %v406
    %v716 = vsel %vm49, %v480, %v556
    %v717 = vsel %vm712, %v716, %v633
    %v718 = vsel %vm714, %v717, %v710
    %v719 = vpack.c.bf16 %v718, %v715
    %v720 = vld [vmem:[%s4] sm:$0xf]
    %v721 = vld [vmem:[%s4 + $0x4] sm:$0xf]
    %v722 = vld [vmem:[%s4 + $0x8] sm:$0xf]
    %v723 = vld [vmem:[%s4 + $0xc] sm:$0xf]
    %v724 = vld [vmem:[%s6] sm:$0x1]
    %v726 = vlaneseq
    %v727 = vshrl.u32 %v726, 7
    %v728 = vsub.s32 0, %v727
    %v729 = vrot.slane %v724, %v728
    %732 = vrot.lane.b32.xlu0 %v719, 32
    %v733 = vpop.permute.xlu0 %732
    %v738 = vunpack.c.l.b16 %v720
    %v739 = vunpack.c.l.b16 %v721
    %v740 = vunpack.c.l.b16 %v722
    %v741 = vunpack.c.l.b16 %v723
    %v742 = vpack.c.b16 %v739, %v738
    %v743 = vpack.c.b16 %v741, %v740
    %v747 = vsel %vm110, %v733, 0
    %749 = vmatprep.subr.bf16.mxu0 0
    %750 = vmatpush1.bf16.msra.mxu0 0
    %751 = vmatprep.subr.bf16.mxu0 0
    %752 = vmatpush1.bf16.msra.mxu0 0
    %753 = vmatprep.subr.bf16.mxu0 0
    %754 = vmatpush1.bf16.msra.mxu0 0
    %755 = vmatprep.subr.bf16.mxu0 0
    %756 = vmatpush1.bf16.msra.mxu0 0
    %757 = vmatprep.subr.bf16.mxu0 0
    %758 = vmatpush1.bf16.msra.mxu0 0
    %759 = vmatprep.subr.bf16.mxu0 0
    %760 = vmatpush1.bf16.msra.mxu0 0
    %761 = vmatprep.subr.bf16.mxu0 0
    %762 = vmatpush1.bf16.msra.mxu0 %v743
    %763 = vmatprep.subr.bf16.mxu0 0
    %764 = vmatpush1.bf16.msra.mxu0 %v742
    %765 = vmatprep.subr.bf16.mxu0 0
    %766 = vmatpush2.bf16.msra.mxu0 0
    %767 = vmatprep.subr.bf16.mxu0 0
    %768 = vmatpush2.bf16.msra.mxu0 0
    %769 = vmatprep.subr.bf16.mxu0 0
    %770 = vmatpush2.bf16.msra.mxu0 0
    %771 = vmatprep.subr.bf16.mxu0 0
    %772 = vmatpush2.bf16.msra.mxu0 0
    %773 = vmatprep.subr.bf16.mxu0 0
    %774 = vmatpush2.bf16.msra.mxu0 0
    %775 = vmatprep.subr.bf16.mxu0 0
    %776 = vmatpush2.bf16.msra.mxu0 0
    %777 = vmatprep.subr.bf16.mxu0 0
    %778 = vmatpush2.bf16.msra.mxu0 0
    %779 = vmatprep.subr.bf16.mxu0 0
    %780 = vmatpush2.bf16.msra.mxu0 0
    %781 = vmatprep.mubr.bf16.mxu0 0
    %782 = vmatmul.mubr.bf16.gmra.mxu0 %v747
    %v783 = vpop.f32.mrf.mxu0
    %v784 = vadd.f32 %v729, %v783
    %v785 = vpop.f32.mrf.mxu0
    %v786 = vpop.f32.mrf.mxu0
    %v787 = vadd.f32 %v729, %v786
    %v788 = vpop.f32.mrf.mxu0
    %789 = vdwg.mxu0
    %v790 = vld [vmem:[%s5] sm:$0xf]
    %v791 = vld [vmem:[%s5 + $0x4] sm:$0xf]
    %v792 = vld [vmem:[%s5 + $0x8] sm:$0xf]
    %v793 = vld [vmem:[%s5 + $0xc] sm:$0xf]
    %v798 = vunpack.c.l.b16 %v790
    %v799 = vunpack.c.l.b16 %v791
    %v800 = vunpack.c.l.b16 %v792
    %v801 = vunpack.c.l.b16 %v793
    %v802 = vpack.c.b16 %v799, %v798
    %v803 = vpack.c.b16 %v801, %v800
    %806 = vmatprep.subr.bf16.mxu0 0
    %807 = vmatpush1.bf16.msra.mxu0 0
    %808 = vmatprep.subr.bf16.mxu0 0
    %809 = vmatpush1.bf16.msra.mxu0 0
    %810 = vmatprep.subr.bf16.mxu0 0
    %811 = vmatpush1.bf16.msra.mxu0 0
    %812 = vmatprep.subr.bf16.mxu0 0
    %813 = vmatpush1.bf16.msra.mxu0 0
    %814 = vmatprep.subr.bf16.mxu0 0
    %815 = vmatpush1.bf16.msra.mxu0 0
    %816 = vmatprep.subr.bf16.mxu0 0
    %817 = vmatpush1.bf16.msra.mxu0 0
    %818 = vmatprep.subr.bf16.mxu0 0
    %819 = vmatpush1.bf16.msra.mxu0 %v803
    %820 = vmatprep.subr.bf16.mxu0 0
    %821 = vmatpush1.bf16.msra.mxu0 %v802
    %822 = vmatprep.subr.bf16.mxu0 0
    %823 = vmatpush2.bf16.msra.mxu0 0
    %824 = vmatprep.subr.bf16.mxu0 0
    %825 = vmatpush2.bf16.msra.mxu0 0
    %826 = vmatprep.subr.bf16.mxu0 0
    %827 = vmatpush2.bf16.msra.mxu0 0
    %828 = vmatprep.subr.bf16.mxu0 0
    %829 = vmatpush2.bf16.msra.mxu0 0
    %830 = vmatprep.subr.bf16.mxu0 0
    %831 = vmatpush2.bf16.msra.mxu0 0
    %832 = vmatprep.subr.bf16.mxu0 0
    %833 = vmatpush2.bf16.msra.mxu0 0
    %834 = vmatprep.subr.bf16.mxu0 0
    %835 = vmatpush2.bf16.msra.mxu0 0
    %836 = vmatprep.subr.bf16.mxu0 0
    %837 = vmatpush2.bf16.msra.mxu0 0
    %838 = vmatprep.mubr.bf16.mxu0 0
    %839 = vmatmul.mubr.bf16.gmra.mxu0 %v112
    %v840 = vpop.f32.mrf.mxu0
    %v841 = vadd.f32 0.0, %v840
    %v842 = vpop.f32.mrf.mxu0
    %v843 = vpop.f32.mrf.mxu0
    %v844 = vpop.f32.mrf.mxu0
    %845 = vdwg.mxu0
    %v846 = vadd.f32 %v784, %v841
    %v847 = vmul.f32 %v846, 0.5
    %v848 = vtanh.pop %v847
    %v849 = vadd.f32 %v848, 1.0
    %v850 = vmul.f32 %v849, 0.5
    %v851 = vtanh.pop %v846
    %v852 = vmul.f32 %v850, 0.0
    %854 = vrot.lane.b32.xlu0 %v851, 64
    %v855 = vpop.permute.xlu0 %854
    %v857 = vmul.f32 %v850, %v855
    %859 = vrot.lane.b32.xlu0 %v857, 32
    %v860 = vpop.permute.xlu0 %859
    %v862 = vadd.f32 %v852, %v860
    %v863 = vtanh.pop %v862
    %865 = vrot.lane.b32.xlu0 %v863, 64
    %v866 = vpop.permute.xlu0 %865
    %v868 = vmul.f32 %v850, %v866
    %v869 = vpack.c.bf16 %v868, %v868
    %871 = vrot.lane.b32.xlu0 %v869, 32
    %v872 = vpop.permute.xlu0 %871
    %v874 = vsel %vm110, %v872, 0
    %876 = vmatprep.subr.bf16.mxu0 0
    %877 = vmatpush1.bf16.msra.mxu0 0
    %878 = vmatprep.subr.bf16.mxu0 0
    %879 = vmatpush1.bf16.msra.mxu0 0
    %880 = vmatprep.subr.bf16.mxu0 0
    %881 = vmatpush1.bf16.msra.mxu0 0
    %882 = vmatprep.subr.bf16.mxu0 0
    %883 = vmatpush1.bf16.msra.mxu0 0
    %884 = vmatprep.subr.bf16.mxu0 0
    %885 = vmatpush1.bf16.msra.mxu0 0
    %886 = vmatprep.subr.bf16.mxu0 0
    %887 = vmatpush1.bf16.msra.mxu0 0
    %888 = vmatprep.subr.bf16.mxu0 0
    %889 = vmatpush1.bf16.msra.mxu0 %v803
    %890 = vmatprep.subr.bf16.mxu0 0
    %891 = vmatpush1.bf16.msra.mxu0 %v802
    %892 = vmatprep.subr.bf16.mxu0 0
    %893 = vmatpush2.bf16.msra.mxu0 0
    %894 = vmatprep.subr.bf16.mxu0 0
    %895 = vmatpush2.bf16.msra.mxu0 0
    %896 = vmatprep.subr.bf16.mxu0 0
    %897 = vmatpush2.bf16.msra.mxu0 0
    %898 = vmatprep.subr.bf16.mxu0 0
    %899 = vmatpush2.bf16.msra.mxu0 0
    %900 = vmatprep.subr.bf16.mxu0 0
    %901 = vmatpush2.bf16.msra.mxu0 0
    %902 = vmatprep.subr.bf16.mxu0 0
    %903 = vmatpush2.bf16.msra.mxu0 0
    %904 = vmatprep.subr.bf16.mxu0 0
    %905 = vmatpush2.bf16.msra.mxu0 0
    %906 = vmatprep.subr.bf16.mxu0 0
    %907 = vmatpush2.bf16.msra.mxu0 0
    %908 = vmatprep.mubr.bf16.mxu0 0
    %909 = vmatmul.mubr.bf16.gmra.mxu0 %v874
    %v910 = vpop.f32.mrf.mxu0
    %v911 = vadd.f32 0.0, %v910
    %v912 = vpop.f32.mrf.mxu0
    %v913 = vpop.f32.mrf.mxu0
    %v914 = vpop.f32.mrf.mxu0
    %915 = vdwg.mxu0
    %v917 = vrot.slane %v911, 6
    %v919 = vadd.f32 %v784, %v917
    %v920 = vmul.f32 %v919, 0.5
    %v921 = vtanh.pop %v920
    %v922 = vadd.f32 %v921, 1.0
    %v923 = vmul.f32 %v922, 0.5
    %v924 = vtanh.pop %v919
    %v926 = vrot.slane %v862, 6
    %v928 = vmul.f32 %v923, %v926
    %930 = vrot.lane.b32.xlu0 %v924, 64
    %v931 = vpop.permute.xlu0 %930
    %v933 = vmul.f32 %v923, %v931
    %935 = vrot.lane.b32.xlu0 %v933, 32
    %v936 = vpop.permute.xlu0 %935
    %v938 = vadd.f32 %v928, %v936
    %v939 = vtanh.pop %v938
    %941 = vrot.lane.b32.xlu0 %v939, 64
    %v942 = vpop.permute.xlu0 %941
    %v944 = vmul.f32 %v923, %v942
    %v945 = vpack.c.bf16 %v944, %v944
    %v947 = vrot.slane %v945, 1
    %948 = vrot.lane.b32.xlu0 %v947, 32
    %v949 = vpop.permute.xlu0 %948
    %v951 = vsel %vm110, %v949, 0
    %953 = vmatprep.subr.bf16.mxu0 0
    %954 = vmatpush1.bf16.msra.mxu0 0
    %955 = vmatprep.subr.bf16.mxu0 0
    %956 = vmatpush1.bf16.msra.mxu0 0
    %957 = vmatprep.subr.bf16.mxu0 0
    %958 = vmatpush1.bf16.msra.mxu0 0
    %959 = vmatprep.subr.bf16.mxu0 0
    %960 = vmatpush1.bf16.msra.mxu0 0
    %961 = vmatprep.subr.bf16.mxu0 0
    %962 = vmatpush1.bf16.msra.mxu0 0
    %963 = vmatprep.subr.bf16.mxu0 0
    %964 = vmatpush1.bf16.msra.mxu0 0
    %965 = vmatprep.subr.bf16.mxu0 0
    %966 = vmatpush1.bf16.msra.mxu0 %v803
    %967 = vmatprep.subr.bf16.mxu0 0
    %968 = vmatpush1.bf16.msra.mxu0 %v802
    %969 = vmatprep.subr.bf16.mxu0 0
    %970 = vmatpush2.bf16.msra.mxu0 0
    %971 = vmatprep.subr.bf16.mxu0 0
    %972 = vmatpush2.bf16.msra.mxu0 0
    %973 = vmatprep.subr.bf16.mxu0 0
    %974 = vmatpush2.bf16.msra.mxu0 0
    %975 = vmatprep.subr.bf16.mxu0 0
    %976 = vmatpush2.bf16.msra.mxu0 0
    %977 = vmatprep.subr.bf16.mxu0 0
    %978 = vmatpush2.bf16.msra.mxu0 0
    %979 = vmatprep.subr.bf16.mxu0 0
    %980 = vmatpush2.bf16.msra.mxu0 0
    %981 = vmatprep.subr.bf16.mxu0 0
    %982 = vmatpush2.bf16.msra.mxu0 0
    %983 = vmatprep.subr.bf16.mxu0 0
    %984 = vmatpush2.bf16.msra.mxu0 0
    %985 = vmatprep.mubr.bf16.mxu0 0
    %986 = vmatmul.mubr.bf16.gmra.mxu0 %v951
    %v987 = vpop.f32.mrf.mxu0
    %v988 = vadd.f32 0.0, %v987
    %v989 = vpop.f32.mrf.mxu0
    %v990 = vpop.f32.mrf.mxu0
    %v991 = vpop.f32.mrf.mxu0
    %992 = vdwg.mxu0
    %v994 = vrot.slane %v988, 4
    %v996 = vadd.f32 %v784, %v994
    %v997 = vmul.f32 %v996, 0.5
    %v998 = vtanh.pop %v997
    %v999 = vadd.f32 %v998, 1.0
    %v1000 = vmul.f32 %v999, 0.5
    %v1001 = vtanh.pop %v996
    %v1003 = vrot.slane %v938, 6
    %v1005 = vmul.f32 %v1000, %v1003
    %1007 = vrot.lane.b32.xlu0 %v1001, 64
    %v1008 = vpop.permute.xlu0 %1007
    %v1010 = vmul.f32 %v1000, %v1008
    %1012 = vrot.lane.b32.xlu0 %v1010, 32
    %v1013 = vpop.permute.xlu0 %1012
    %v1015 = vadd.f32 %v1005, %v1013
    %v1016 = vtanh.pop %v1015
    %1018 = vrot.lane.b32.xlu0 %v1016, 64
    %v1019 = vpop.permute.xlu0 %1018
    %v1021 = vmul.f32 %v1000, %v1019
    %v1022 = vpack.c.bf16 %v1021, %v1021
    %v1024 = vrot.slane %v1022, 2
    %1025 = vrot.lane.b32.xlu0 %v1024, 32
    %v1026 = vpop.permute.xlu0 %1025
    %v1028 = vsel %vm110, %v1026, 0
    %1030 = vmatprep.subr.bf16.mxu0 0
    %1031 = vmatpush1.bf16.msra.mxu0 0
    %1032 = vmatprep.subr.bf16.mxu0 0
    %1033 = vmatpush1.bf16.msra.mxu0 0
    %1034 = vmatprep.subr.bf16.mxu0 0
    %1035 = vmatpush1.bf16.msra.mxu0 0
    %1036 = vmatprep.subr.bf16.mxu0 0
    %1037 = vmatpush1.bf16.msra.mxu0 0
    %1038 = vmatprep.subr.bf16.mxu0 0
    %1039 = vmatpush1.bf16.msra.mxu0 0
    %1040 = vmatprep.subr.bf16.mxu0 0
    %1041 = vmatpush1.bf16.msra.mxu0 0
    %1042 = vmatprep.subr.bf16.mxu0 0
    %1043 = vmatpush1.bf16.msra.mxu0 %v803
    %1044 = vmatprep.subr.bf16.mxu0 0
    %1045 = vmatpush1.bf16.msra.mxu0 %v802
    %1046 = vmatprep.subr.bf16.mxu0 0
    %1047 = vmatpush2.bf16.msra.mxu0 0
    %1048 = vmatprep.subr.bf16.mxu0 0
    %1049 = vmatpush2.bf16.msra.mxu0 0
    %1050 = vmatprep.subr.bf16.mxu0 0
    %1051 = vmatpush2.bf16.msra.mxu0 0
    %1052 = vmatprep.subr.bf16.mxu0 0
    %1053 = vmatpush2.bf16.msra.mxu0 0
    %1054 = vmatprep.subr.bf16.mxu0 0
    %1055 = vmatpush2.bf16.msra.mxu0 0
    %1056 = vmatprep.subr.bf16.mxu0 0
    %1057 = vmatpush2.bf16.msra.mxu0 0
    %1058 = vmatprep.subr.bf16.mxu0 0
    %1059 = vmatpush2.bf16.msra.mxu0 0
    %1060 = vmatprep.subr.bf16.mxu0 0
    %1061 = vmatpush2.bf16.msra.mxu0 0
    %1062 = vmatprep.mubr.bf16.mxu0 0
    %1063 = vmatmul.mubr.bf16.gmra.mxu0 %v1028
    %v1064 = vpop.f32.mrf.mxu0
    %v1065 = vadd.f32 0.0, %v1064
    %v1066 = vpop.f32.mrf.mxu0
    %v1067 = vpop.f32.mrf.mxu0
    %v1068 = vpop.f32.mrf.mxu0
    %1069 = vdwg.mxu0
    %v1071 = vrot.slane %v1065, 2
    %v1073 = vadd.f32 %v784, %v1071
    %v1074 = vmul.f32 %v1073, 0.5
    %v1075 = vtanh.pop %v1074
    %v1076 = vadd.f32 %v1075, 1.0
    %v1077 = vmul.f32 %v1076, 0.5
    %v1078 = vtanh.pop %v1073
    %v1080 = vrot.slane %v1015, 6
    %v1082 = vmul.f32 %v1077, %v1080
    %1084 = vrot.lane.b32.xlu0 %v1078, 64
    %v1085 = vpop.permute.xlu0 %1084
    %v1087 = vmul.f32 %v1077, %v1085
    %1089 = vrot.lane.b32.xlu0 %v1087, 32
    %v1090 = vpop.permute.xlu0 %1089
    %v1092 = vadd.f32 %v1082, %v1090
    %v1093 = vtanh.pop %v1092
    %1095 = vrot.lane.b32.xlu0 %v1093, 64
    %v1096 = vpop.permute.xlu0 %1095
    %v1098 = vmul.f32 %v1077, %v1096
    %v1099 = vpack.c.bf16 %v1098, %v1098
    %v1101 = vrot.slane %v1099, 3
    %1102 = vrot.lane.b32.xlu0 %v1101, 32
    %v1103 = vpop.permute.xlu0 %1102
    %v1105 = vsel %vm110, %v1103, 0
    %1107 = vmatprep.subr.bf16.mxu0 0
    %1108 = vmatpush1.bf16.msra.mxu0 0
    %1109 = vmatprep.subr.bf16.mxu0 0
    %1110 = vmatpush1.bf16.msra.mxu0 0
    %1111 = vmatprep.subr.bf16.mxu0 0
    %1112 = vmatpush1.bf16.msra.mxu0 0
    %1113 = vmatprep.subr.bf16.mxu0 0
    %1114 = vmatpush1.bf16.msra.mxu0 0
    %1115 = vmatprep.subr.bf16.mxu0 0
    %1116 = vmatpush1.bf16.msra.mxu0 0
    %1117 = vmatprep.subr.bf16.mxu0 0
    %1118 = vmatpush1.bf16.msra.mxu0 0
    %1119 = vmatprep.subr.bf16.mxu0 0
    %1120 = vmatpush1.bf16.msra.mxu0 %v803
    %1121 = vmatprep.subr.bf16.mxu0 0
    %1122 = vmatpush1.bf16.msra.mxu0 %v802
    %1123 = vmatprep.subr.bf16.mxu0 0
    %1124 = vmatpush2.bf16.msra.mxu0 0
    %1125 = vmatprep.subr.bf16.mxu0 0
    %1126 = vmatpush2.bf16.msra.mxu0 0
    %1127 = vmatprep.subr.bf16.mxu0 0
    %1128 = vmatpush2.bf16.msra.mxu0 0
    %1129 = vmatprep.subr.bf16.mxu0 0
    %1130 = vmatpush2.bf16.msra.mxu0 0
    %1131 = vmatprep.subr.bf16.mxu0 0
    %1132 = vmatpush2.bf16.msra.mxu0 0
    %1133 = vmatprep.subr.bf16.mxu0 0
    %1134 = vmatpush2.bf16.msra.mxu0 0
    %1135 = vmatprep.subr.bf16.mxu0 0
    %1136 = vmatpush2.bf16.msra.mxu0 0
    %1137 = vmatprep.subr.bf16.mxu0 0
    %1138 = vmatpush2.bf16.msra.mxu0 0
    %1139 = vmatprep.mubr.bf16.mxu0 0
    %1140 = vmatmul.mubr.bf16.gmra.mxu0 %v1105
    %v1141 = vpop.f32.mrf.mxu0
    %v1142 = vadd.f32 0.0, %v1141
    %v1143 = vpop.f32.mrf.mxu0
    %v1144 = vpop.f32.mrf.mxu0
    %v1145 = vpop.f32.mrf.mxu0
    %1146 = vdwg.mxu0
    %v1147 = vadd.f32 %v787, %v1142
    %v1148 = vmul.f32 %v1147, 0.5
    %v1149 = vtanh.pop %v1148
    %v1150 = vadd.f32 %v1149, 1.0
    %v1151 = vmul.f32 %v1150, 0.5
    %v1152 = vtanh.pop %v1147
    %v1154 = vrot.slane %v1092, 6
    %v1156 = vmul.f32 %v1151, %v1154
    %1158 = vrot.lane.b32.xlu0 %v1152, 64
    %v1159 = vpop.permute.xlu0 %1158
    %v1161 = vmul.f32 %v1151, %v1159
    %1163 = vrot.lane.b32.xlu0 %v1161, 32
    %v1164 = vpop.permute.xlu0 %1163
    %v1166 = vadd.f32 %v1156, %v1164
    %v1167 = vtanh.pop %v1166
    %1169 = vrot.lane.b32.xlu0 %v1167, 64
    %v1170 = vpop.permute.xlu0 %1169
    %v1172 = vmul.f32 %v1151, %v1170
    %v1173 = vpack.c.bf16 %v1172, %v1172
    %1175 = vrot.lane.b32.xlu0 %v1173, 32
    %v1176 = vpop.permute.xlu0 %1175
    %v1178 = vsel %vm110, %v1176, 0
    %1180 = vmatprep.subr.bf16.mxu0 0
    %1181 = vmatpush1.bf16.msra.mxu0 0
    %1182 = vmatprep.subr.bf16.mxu0 0
    %1183 = vmatpush1.bf16.msra.mxu0 0
    %1184 = vmatprep.subr.bf16.mxu0 0
    %1185 = vmatpush1.bf16.msra.mxu0 0
    %1186 = vmatprep.subr.bf16.mxu0 0
    %1187 = vmatpush1.bf16.msra.mxu0 0
    %1188 = vmatprep.subr.bf16.mxu0 0
    %1189 = vmatpush1.bf16.msra.mxu0 0
    %1190 = vmatprep.subr.bf16.mxu0 0
    %1191 = vmatpush1.bf16.msra.mxu0 0
    %1192 = vmatprep.subr.bf16.mxu0 0
    %1193 = vmatpush1.bf16.msra.mxu0 %v803
    %1194 = vmatprep.subr.bf16.mxu0 0
    %1195 = vmatpush1.bf16.msra.mxu0 %v802
    %1196 = vmatprep.subr.bf16.mxu0 0
    %1197 = vmatpush2.bf16.msra.mxu0 0
    %1198 = vmatprep.subr.bf16.mxu0 0
    %1199 = vmatpush2.bf16.msra.mxu0 0
    %1200 = vmatprep.subr.bf16.mxu0 0
    %1201 = vmatpush2.bf16.msra.mxu0 0
    %1202 = vmatprep.subr.bf16.mxu0 0
    %1203 = vmatpush2.bf16.msra.mxu0 0
    %1204 = vmatprep.subr.bf16.mxu0 0
    %1205 = vmatpush2.bf16.msra.mxu0 0
    %1206 = vmatprep.subr.bf16.mxu0 0
    %1207 = vmatpush2.bf16.msra.mxu0 0
    %1208 = vmatprep.subr.bf16.mxu0 0
    %1209 = vmatpush2.bf16.msra.mxu0 0
    %1210 = vmatprep.subr.bf16.mxu0 0
    %1211 = vmatpush2.bf16.msra.mxu0 0
    %1212 = vmatprep.mubr.bf16.mxu0 0
    %1213 = vmatmul.mubr.bf16.gmra.mxu0 %v1178
    %v1214 = vpop.f32.mrf.mxu0
    %v1215 = vadd.f32 0.0, %v1214
    %v1216 = vpop.f32.mrf.mxu0
    %v1217 = vpop.f32.mrf.mxu0
    %v1218 = vpop.f32.mrf.mxu0
    %1219 = vdwg.mxu0
    %v1221 = vrot.slane %v1215, 6
    %v1223 = vadd.f32 %v787, %v1221
    %v1224 = vmul.f32 %v1223, 0.5
    %v1225 = vtanh.pop %v1224
    %v1226 = vadd.f32 %v1225, 1.0
    %v1227 = vmul.f32 %v1226, 0.5
    %v1228 = vtanh.pop %v1223
    %v1230 = vrot.slane %v1166, 6
    %v1232 = vmul.f32 %v1227, %v1230
    %1234 = vrot.lane.b32.xlu0 %v1228, 64
    %v1235 = vpop.permute.xlu0 %1234
    %v1237 = vmul.f32 %v1227, %v1235
    %1239 = vrot.lane.b32.xlu0 %v1237, 32
    %v1240 = vpop.permute.xlu0 %1239
    %v1242 = vadd.f32 %v1232, %v1240
    %v1243 = vtanh.pop %v1242
    %1245 = vrot.lane.b32.xlu0 %v1243, 64
    %v1246 = vpop.permute.xlu0 %1245
    %v1248 = vmul.f32 %v1227, %v1246
    %v1249 = vpack.c.bf16 %v1248, %v1248
    %v1251 = vrot.slane %v1249, 1
    %1252 = vrot.lane.b32.xlu0 %v1251, 32
    %v1253 = vpop.permute.xlu0 %1252
    %v1255 = vsel %vm110, %v1253, 0
    %1257 = vmatprep.subr.bf16.mxu0 0
    %1258 = vmatpush1.bf16.msra.mxu0 0
    %1259 = vmatprep.subr.bf16.mxu0 0
    %1260 = vmatpush1.bf16.msra.mxu0 0
    %1261 = vmatprep.subr.bf16.mxu0 0
    %1262 = vmatpush1.bf16.msra.mxu0 0
    %1263 = vmatprep.subr.bf16.mxu0 0
    %1264 = vmatpush1.bf16.msra.mxu0 0
    %1265 = vmatprep.subr.bf16.mxu0 0
    %1266 = vmatpush1.bf16.msra.mxu0 0
    %1267 = vmatprep.subr.bf16.mxu0 0
    %1268 = vmatpush1.bf16.msra.mxu0 0
    %1269 = vmatprep.subr.bf16.mxu0 0
    %1270 = vmatpush1.bf16.msra.mxu0 %v803
    %1271 = vmatprep.subr.bf16.mxu0 0
    %1272 = vmatpush1.bf16.msra.mxu0 %v802
    %1273 = vmatprep.subr.bf16.mxu0 0
    %1274 = vmatpush2.bf16.msra.mxu0 0
    %1275 = vmatprep.subr.bf16.mxu0 0
    %1276 = vmatpush2.bf16.msra.mxu0 0
    %1277 = vmatprep.subr.bf16.mxu0 0
    %1278 = vmatpush2.bf16.msra.mxu0 0
    %1279 = vmatprep.subr.bf16.mxu0 0
    %1280 = vmatpush2.bf16.msra.mxu0 0
    %1281 = vmatprep.subr.bf16.mxu0 0
    %1282 = vmatpush2.bf16.msra.mxu0 0
    %1283 = vmatprep.subr.bf16.mxu0 0
    %1284 = vmatpush2.bf16.msra.mxu0 0
    %1285 = vmatprep.subr.bf16.mxu0 0
    %1286 = vmatpush2.bf16.msra.mxu0 0
    %1287 = vmatprep.subr.bf16.mxu0 0
    %1288 = vmatpush2.bf16.msra.mxu0 0
    %1289 = vmatprep.mubr.bf16.mxu0 0
    %1290 = vmatmul.mubr.bf16.gmra.mxu0 %v1255
    %v1291 = vpop.f32.mrf.mxu0
    %v1292 = vadd.f32 0.0, %v1291
    %v1293 = vpop.f32.mrf.mxu0
    %v1294 = vpop.f32.mrf.mxu0
    %v1295 = vpop.f32.mrf.mxu0
    %1296 = vdwg.mxu0
    %v1298 = vrot.slane %v1292, 4
    %v1300 = vadd.f32 %v787, %v1298
    %v1301 = vmul.f32 %v1300, 0.5
    %v1302 = vtanh.pop %v1301
    %v1303 = vadd.f32 %v1302, 1.0
    %v1304 = vmul.f32 %v1303, 0.5
    %v1305 = vtanh.pop %v1300
    %v1307 = vrot.slane %v1242, 6
    %v1309 = vmul.f32 %v1304, %v1307
    %1311 = vrot.lane.b32.xlu0 %v1305, 64
    %v1312 = vpop.permute.xlu0 %1311
    %v1314 = vmul.f32 %v1304, %v1312
    %1316 = vrot.lane.b32.xlu0 %v1314, 32
    %v1317 = vpop.permute.xlu0 %1316
    %v1319 = vadd.f32 %v1309, %v1317
    %v1320 = vtanh.pop %v1319
    %1322 = vrot.lane.b32.xlu0 %v1320, 64
    %v1323 = vpop.permute.xlu0 %1322
    %v1325 = vmul.f32 %v1304, %v1323
    %v1326 = vpack.c.bf16 %v1325, %v1325
    %v1328 = vrot.slane %v1326, 2
    %1329 = vrot.lane.b32.xlu0 %v1328, 32
    %v1330 = vpop.permute.xlu0 %1329
    %v1332 = vsel %vm110, %v1330, 0
    %1334 = vmatprep.subr.bf16.mxu0 0
    %1335 = vmatpush1.bf16.msra.mxu0 0
    %1336 = vmatprep.subr.bf16.mxu0 0
    %1337 = vmatpush1.bf16.msra.mxu0 0
    %1338 = vmatprep.subr.bf16.mxu0 0
    %1339 = vmatpush1.bf16.msra.mxu0 0
    %1340 = vmatprep.subr.bf16.mxu0 0
    %1341 = vmatpush1.bf16.msra.mxu0 0
    %1342 = vmatprep.subr.bf16.mxu0 0
    %1343 = vmatpush1.bf16.msra.mxu0 0
    %1344 = vmatprep.subr.bf16.mxu0 0
    %1345 = vmatpush1.bf16.msra.mxu0 0
    %1346 = vmatprep.subr.bf16.mxu0 0
    %1347 = vmatpush1.bf16.msra.mxu0 %v803
    %1348 = vmatprep.subr.bf16.mxu0 0
    %1349 = vmatpush1.bf16.msra.mxu0 %v802
    %1350 = vmatprep.subr.bf16.mxu0 0
    %1351 = vmatpush2.bf16.msra.mxu0 0
    %1352 = vmatprep.subr.bf16.mxu0 0
    %1353 = vmatpush2.bf16.msra.mxu0 0
    %1354 = vmatprep.subr.bf16.mxu0 0
    %1355 = vmatpush2.bf16.msra.mxu0 0
    %1356 = vmatprep.subr.bf16.mxu0 0
    %1357 = vmatpush2.bf16.msra.mxu0 0
    %1358 = vmatprep.subr.bf16.mxu0 0
    %1359 = vmatpush2.bf16.msra.mxu0 0
    %1360 = vmatprep.subr.bf16.mxu0 0
    %1361 = vmatpush2.bf16.msra.mxu0 0
    %1362 = vmatprep.subr.bf16.mxu0 0
    %1363 = vmatpush2.bf16.msra.mxu0 0
    %1364 = vmatprep.subr.bf16.mxu0 0
    %1365 = vmatpush2.bf16.msra.mxu0 0
    %1366 = vmatprep.mubr.bf16.mxu0 0
    %1367 = vmatmul.mubr.bf16.gmra.mxu0 %v1332
    %v1368 = vpop.f32.mrf.mxu0
    %v1369 = vadd.f32 0.0, %v1368
    %v1370 = vpop.f32.mrf.mxu0
    %v1371 = vpop.f32.mrf.mxu0
    %v1372 = vpop.f32.mrf.mxu0
    %1373 = vdwg.mxu0
    %v1375 = vrot.slane %v1369, 2
    %v1377 = vadd.f32 %v787, %v1375
    %v1378 = vmul.f32 %v1377, 0.5
    %v1379 = vtanh.pop %v1378
    %v1380 = vadd.f32 %v1379, 1.0
    %v1381 = vmul.f32 %v1380, 0.5
    %v1382 = vtanh.pop %v1377
    %v1384 = vrot.slane %v1319, 6
    %v1386 = vmul.f32 %v1381, %v1384
    %1388 = vrot.lane.b32.xlu0 %v1382, 64
    %v1389 = vpop.permute.xlu0 %1388
    %v1391 = vmul.f32 %v1381, %v1389
    %1393 = vrot.lane.b32.xlu0 %v1391, 32
    %v1394 = vpop.permute.xlu0 %1393
    %v1396 = vadd.f32 %v1386, %v1394
    %v1397 = vtanh.pop %v1396
    %1399 = vrot.lane.b32.xlu0 %v1397, 64
    %v1400 = vpop.permute.xlu0 %1399
    %v1402 = vmul.f32 %v1381, %v1400
    %v1403 = vld [vmem:[%s7] sm:$0xff]
    %v1404 = vld [vmem:[%s7 + $0x8] sm:$0xff]
    %v1405 = vld [vmem:[%s7 + $0x10] sm:$0xff]
    %v1406 = vld [vmem:[%s7 + $0x18] sm:$0xff]
    %v1407 = vld [vmem:[%s8] sm:$0x1]
    %v1409 = vlaneseq
    %v1410 = vshrl.u32 %v1409, 7
    %v1411 = vsub.s32 0, %v1410
    %v1412 = vrot.slane %v1407, %v1411
    %v1415 = vrot.slane %v1402, 6
    %1416 = vrot.lane.b32.xlu0 %v1415, 32
    %v1417 = vpop.permute.xlu0 %1416
    %v1418 = vsel %vm110, %v1417, 0
    %1420 = vmatprep.subr.mxu0 0.0
    %1421 = vmatpush1.msra.mxu0 0.0
    %1422 = vmatprep.subr.mxu0 0.0
    %1423 = vmatpush1.msra.mxu0 0.0
    %1424 = vmatprep.subr.mxu0 0.0
    %1425 = vmatpush1.msra.mxu0 0.0
    %1426 = vmatprep.subr.mxu0 0.0
    %1427 = vmatpush1.msra.mxu0 0.0
    %1428 = vmatprep.subr.mxu0 0.0
    %1429 = vmatpush1.msra.mxu0 0.0
    %1430 = vmatprep.subr.mxu0 0.0
    %1431 = vmatpush1.msra.mxu0 0.0
    %1432 = vmatprep.subr.mxu0 0.0
    %1433 = vmatpush1.msra.mxu0 0.0
    %1434 = vmatprep.subr.mxu0 0.0
    %1435 = vmatpush1.msra.mxu0 0.0
    %1436 = vmatprep.subr.mxu0 0.0
    %1437 = vmatpush1.msra.mxu0 0.0
    %1438 = vmatprep.subr.mxu0 0.0
    %1439 = vmatpush1.msra.mxu0 0.0
    %1440 = vmatprep.subr.mxu0 0.0
    %1441 = vmatpush1.msra.mxu0 0.0
    %1442 = vmatprep.subr.mxu0 0.0
    %1443 = vmatpush1.msra.mxu0 0.0
    %1444 = vmatprep.subr.mxu0 0.0
    %1445 = vmatpush1.msra.mxu0 %v1406
    %1446 = vmatprep.subr.mxu0 0.0
    %1447 = vmatpush1.msra.mxu0 %v1405
    %1448 = vmatprep.subr.mxu0 0.0
    %1449 = vmatpush1.msra.mxu0 %v1404
    %1450 = vmatprep.subr.mxu0 0.0
    %1451 = vmatpush1.msra.mxu0 %v1403
    %1452 = vmatprep.subr.mxu0 0.0
    %1453 = vmatpush2.msra.mxu0 0.0
    %1454 = vmatprep.subr.mxu0 0.0
    %1455 = vmatpush2.msra.mxu0 0.0
    %1456 = vmatprep.subr.mxu0 0.0
    %1457 = vmatpush2.msra.mxu0 0.0
    %1458 = vmatprep.subr.mxu0 0.0
    %1459 = vmatpush2.msra.mxu0 0.0
    %1460 = vmatprep.subr.mxu0 0.0
    %1461 = vmatpush2.msra.mxu0 0.0
    %1462 = vmatprep.subr.mxu0 0.0
    %1463 = vmatpush2.msra.mxu0 0.0
    %1464 = vmatprep.subr.mxu0 0.0
    %1465 = vmatpush2.msra.mxu0 0.0
    %1466 = vmatprep.subr.mxu0 0.0
    %1467 = vmatpush2.msra.mxu0 0.0
    %1468 = vmatprep.subr.mxu0 0.0
    %1469 = vmatpush2.msra.mxu0 0.0
    %1470 = vmatprep.subr.mxu0 0.0
    %1471 = vmatpush2.msra.mxu0 0.0
    %1472 = vmatprep.subr.mxu0 0.0
    %1473 = vmatpush2.msra.mxu0 0.0
    %1474 = vmatprep.subr.mxu0 0.0
    %1475 = vmatpush2.msra.mxu0 0.0
    %1476 = vmatprep.subr.mxu0 0.0
    %1477 = vmatpush2.msra.mxu0 0.0
    %1478 = vmatprep.subr.mxu0 0.0
    %1479 = vmatpush2.msra.mxu0 0.0
    %1480 = vmatprep.subr.mxu0 0.0
    %1481 = vmatpush2.msra.mxu0 0.0
    %1482 = vmatprep.subr.mxu0 0.0
    %1483 = vmatpush2.msra.mxu0 0.0
    %1484 = vmatprep.mubr.f32.mxu0 0.0
    %1485 = vmatmul.mubr.f32.gmra.mxu0 %v1418
    %v1486 = vpop.f32.mrf.mxu0
    %v1487 = vadd.f32 %v1412, %v1486
    %v1488 = vpop.f32.mrf.mxu0
    %1489 = vdwg.mxu0
    %v1490 = vmul.f32 %v1487, 0.5
    %v1491 = vtanh.pop %v1490
    %v1492 = vadd.f32 %v1491, 1.0
    %v1493 = vmul.f32 %v1492, 0.5
    %vm1494 = vcmask 33792
    %1495 = vst.msk [vmem:[#allocation2] sm:$0x3] %vm1494, %v1493
    // Predicated region
    $region38: #{tpu_custom_call.1} parent=1 // pred_check
      _
    $region39: #{tpu_custom_call.1} parent=1 // pred_check_branch
      %1497 = sbr.rel (0) target = $region41
    $region40: #{tpu_custom_call.1} parent=1 // pred_region
      %s1499 = ssub.s32 32, 32
      %1500 = vsyncadd [#allocation3], %s1499
      %s1502 = sshll.u32 [#allocation2], 4
      %s1503 = int_to_ptr.vmem [resolvable:$true] %s1502
      %1505 = dma.vmem_to_hbm [thread:$0]  %s1503, 32, %s9, [#allocation3]
    $region41: #{tpu_custom_call.1} parent=1 // pred_fallthru
      _
    // Predicated region
    $region42: #{tpu_custom_call.1} parent=1 // pred_check
      _
    $region43: #{tpu_custom_call.1} parent=1 // pred_check_branch
      %1507 = sbr.rel (0) target = $region45
    $region44: #{tpu_custom_call.1} parent=1 // pred_region
      %1508 = dma.done [#allocation3], 32
    $region45: #{tpu_custom_call.1} parent=1 // pred_fallthru
      _
    %1509 = vsyncpa [#allocation3], 1

</llo_original>
